<compile_context>
chip_gen: v5e
topology: v5e:2x2
jax: 0.10.0
libtpu: 0.0.40
codegen_flags: <defaults>
</compile_context>

<pallas_src>
import functools

import jax
import jax.numpy as jnp
from jax.experimental import pallas as pl
from jax.experimental.pallas import tpu as pltpu


# --------------------------------------------------------------------------
# Pallas kernel (factory closes over static tiling parameters)
# --------------------------------------------------------------------------
def _make_kernel(*, tile_m, n_batch, k_width, feat, rows_in, rows_buf,
                 total_rows_out, aligned8):
    """rows_in  = tile_m + (k_width-1)*n_batch  (halo'd window DMA'd per tile)
       rows_buf = per-slot scratch rows (rows_in + static slack for ragged tail)
    """
    last_start = total_rows_out - tile_m          # max valid DMA start (static, >=0)
    inv_f = 1.0 / feat

    def kernel(x_hbm, w_ref, b_ref, g_ref, beta_ref, o_ref, xbuf, sem):
        i = pl.program_id(0)
        ng = pl.num_programs(0)

        def tile_copy(tile_idx, slot):
            src_start = jnp.minimum(tile_idx * tile_m, last_start)
            dst_start = slot * rows_buf
            return pltpu.make_async_copy(
                x_hbm.at[pl.ds(src_start, rows_in)],
                xbuf.at[pl.ds(dst_start, rows_in)],
                sem.at[slot])

        # Prime the pipeline on the first step, then always prefetch tile i+1
        # into the other slot while computing tile i (sequential grid semantics).
        @pl.when(i == 0)
        def _prime():
            tile_copy(0, 0).start()

        @pl.when(i + 1 < ng)
        def _prefetch():
            tile_copy(i + 1, (i + 1) & 1).start()

        slot = i & 1
        tile_copy(i, slot).wait()

        # Intra-buffer shift: zero except on a ragged final tile (where the DMA
        # start was clamped so the HBM read stays in bounds).
        d = i * tile_m - jnp.minimum(i * tile_m, last_start)
        base = slot * rows_buf + d

        # Temporal conv: K accumulated (tile_m, F) @ (F, F) MXU matmuls.
        acc = jnp.zeros((tile_m, feat), jnp.float32)
        x_res = None
        for k in range(k_width):
            start = base + k * n_batch
            if aligned8:
                start = pl.multiple_of(start, 8)
            xk = xbuf[pl.ds(start, tile_m), :]            # f32 (tile_m, F)
            if k == k_width - 1:
                x_res = xk                                # exact f32 residual rows
            acc = acc + jnp.dot(xk.astype(w_ref.dtype), w_ref[k],
                                preferred_element_type=jnp.float32)

        y = jnp.maximum(acc + b_ref[...], 0.0) + x_res    # bias + ReLU + residual

        # LayerNorm over F: stable two-pass form, rsqrt on the EUP.
        mean = jnp.sum(y, axis=-1, keepdims=True) * inv_f
        yc = y - mean
        var = jnp.sum(yc * yc, axis=-1, keepdims=True) * inv_f
        o_ref[...] = (yc * jax.lax.rsqrt(var + 1e-5) * g_ref[...]
                      + beta_ref[...]).astype(o_ref.dtype)

    return kernel


# --------------------------------------------------------------------------
# Parameter init / one-time folding (hoisted out of the forward path)
# --------------------------------------------------------------------------
def init_params(key, channels, width, kernel_width):
    F = channels * width
    k1, k2, k3, k4 = jax.random.split(key, 4)
    s = 1.0 / float(channels * kernel_width) ** 0.5
    return dict(
        # conv_w == torch conv2d.weight[:, :, 0, :]  (out_ch, in_ch, K)
        conv_w=jax.random.uniform(k1, (channels, channels, kernel_width),
                                  jnp.float32, -s, s),
        conv_b=jax.random.uniform(k2, (channels,), jnp.float32, -s, s),
        ln_g=1.0 + 0.1 * jax.random.normal(k3, (F,), jnp.float32),
        ln_b=0.1 * jax.random.normal(k4, (F,), jnp.float32),
    )


def prepare_params(params, width, matmul_dtype=jnp.bfloat16):
    """Build kernel-ready operands once (not per forward).

    w_taps[k, c*width + w, o*width + v] = conv_w[o, c, k] * (w == v)
    """
    conv_w = params["conv_w"]
    _, c_in, K = conv_w.shape
    F = c_in * width
    eye = jnp.eye(width, dtype=conv_w.dtype)
    w_taps = jnp.einsum("ock,wv->kcwov", conv_w, eye).reshape(K, F, F)
    return dict(
        w_taps=w_taps.astype(matmul_dtype),
        bias=jnp.repeat(params["conv_b"], width)[None, :].astype(jnp.float32),
        ln_g=params["ln_g"][None, :].astype(jnp.float32),
        ln_b=params["ln_b"][None, :].astype(jnp.float32),
    )


# --------------------------------------------------------------------------
# Forward wrapper
# --------------------------------------------------------------------------
def _round_up(x, m):
    return (x + m - 1) // m * m


def tds_conv2d_block_apply(x, prep, *, channels, width, kernel_width,
                           tile_m=1024):
    """x: (T_in, N, F) float32 -> (T_out, N, F) float32, F = channels*width."""
    T_in, N, F = x.shape
    assert F == channels * width, (F, channels, width)
    # TODO(synk): F not a multiple of 128 needs lane padding + a masked LayerNorm
    # reduction (divide by true F); only lane-dense F is implemented here.
    assert F % 128 == 0, "num_features must be a multiple of 128"
    K = kernel_width
    T_out = T_in - K + 1
    assert T_out >= 1
    M = T_out * N                       # output rows
    R_in = T_in * N                     # input rows

    x2d = x.reshape(R_in, F)            # contiguous reshape, no copy

    # Row tile: as large as possible (amortize per-step overhead), multiple of 8,
    # and <= M so the ragged-tail DMA clamp is valid.  No padding anywhere.
    if tile_m >= M:
        tile_m = M
    else:
        tile_m = max(8, (tile_m // 8) * 8)

    halo = (K - 1) * N
    rows_in = tile_m + halo
    d_max = (tile_m - (M % tile_m)) % tile_m           # static ragged-tail slack
    rows_buf = _round_up(rows_in + d_max, 8)           # per-slot scratch rows
    grid = pl.cdiv(M, tile_m)
    aligned8 = (tile_m % 8 == 0) and (N % 8 == 0) and (M % 8 == 0)

    kernel = _make_kernel(tile_m=tile_m, n_batch=N, k_width=K, feat=F,
                          rows_in=rows_in, rows_buf=rows_buf,
                          total_rows_out=M, aligned8=aligned8)

    # VMEM footprint: input double-buffer + output double-buffer + residents.
    vmem_bytes = (2 * rows_buf * F * 4 + 2 * tile_m * F * 4
                  + K * F * F * 2 + 8 * F * 4)
    vmem_limit = int(min(max(4 * vmem_bytes, 16 << 20), 32 << 20))

    out = pl.pallas_call(
        kernel,
        out_shape=jax.ShapeDtypeStruct((M, F), jnp.float32),
        grid=(grid,),
        in_specs=[
            pl.BlockSpec(memory_space=pl.ANY),              # x2d: raw HBM, manual halo DMA
            pl.BlockSpec((K, F, F), lambda i: (0, 0, 0)),   # per-tap weights (resident)
            pl.BlockSpec((1, F), lambda i: (0, 0)),         # conv bias        (resident)
            pl.BlockSpec((1, F), lambda i: (0, 0)),         # LN gamma         (resident)
            pl.BlockSpec((1, F), lambda i: (0, 0)),         # LN beta          (resident)
        ],
        out_specs=pl.BlockSpec((tile_m, F), lambda i: (i, 0)),
        scratch_shapes=[
            pltpu.VMEM((2 * rows_buf, F), jnp.float32),     # double-buffered halo'd tile
            pltpu.SemaphoreType.DMA((2,)),
        ],
        compiler_params=pltpu.CompilerParams(
            # Manual cross-step prefetch needs sequential grid execution, so the
            # row axis is "arbitrary" (no megacore split of this kernel).
            dimension_semantics=("arbitrary",),
            vmem_limit_bytes=vmem_limit),
        cost_estimate=pl.CostEstimate(
            flops=2 * M * K * F * F + 10 * M * F,
            transcendentals=M,
            bytes_accessed=(M + grid * halo) * F * 4 + M * F * 4
                           + K * F * F * 2 + 8 * F * 4),
    )(x2d, prep["w_taps"], prep["bias"], prep["ln_g"], prep["ln_b"])

    return out.reshape(T_out, N, F)


# --------------------------------------------------------------------------
# Pure-JAX references
# --------------------------------------------------------------------------
def _layer_norm_ref(y, g, b, eps=1e-5):
    mean = y.mean(-1, keepdims=True)
    yc = y - mean
    var = (yc * yc).mean(-1, keepdims=True)
    return yc * jax.lax.rsqrt(var + eps) * g + b


def ref_tds_conv2d_block(x, params, channels, width, kernel_width):
    """Exact-f32 mirror of the PyTorch module (NCHW conv2d, kernel (1, K))."""
    T_in, N, F = x.shape
    K = kernel_width
    T_out = T_in - K + 1
    W, b = params["conv_w"], params["conv_b"]
    xr = jnp.moveaxis(x, 0, -1).reshape(N, channels, width, T_in)
    out = jnp.broadcast_to(b[None, :, None, None],
                           (N, channels, width, T_out)).astype(jnp.float32)
    for k in range(K):
        out = out + jnp.einsum("ncwt,oc->nowt", xr[..., k:k + T_out], W[:, :, k])
    out = jnp.maximum(out, 0.0)
    y = jnp.moveaxis(out.reshape(N, F, T_out), -1, 0)
    y = y + x[K - 1:]
    return _layer_norm_ref(y, params["ln_g"], params["ln_b"])


def ref_matched_precision(x, prep, channels, width, kernel_width):
    """Same math as the kernel (bf16 per-tap matmuls, f32 epilogue) in plain XLA —
    used for a tight check of the Pallas lowering itself."""
    T_in, N, F = x.shape
    K = kernel_width
    T_out = T_in - K + 1
    M = T_out * N
    x2d = x.reshape(T_in * N, F)
    acc = jnp.zeros((M, F), jnp.float32)
    for k in range(K):
        xk = x2d[k * N:k * N + M, :]
        acc = acc + jnp.dot(xk.astype(jnp.bfloat16), prep["w_taps"][k],
                            preferred_element_type=jnp.float32)
    y = jnp.maximum(acc + prep["bias"], 0.0) + x2d[(K - 1) * N:(K - 1) * N + M, :]
    out = _layer_norm_ref(y, prep["ln_g"], prep["ln_b"])
    return out.reshape(T_out, N, F)


# --------------------------------------------------------------------------
if __name__ == "__main__":
    # Small shapes consistent with the module: channels * width = num_features.
    # F = 128 keeps the output lane-dense; N = 8 keeps tap slices sublane aligned;
    # T = 48 -> T_out = 45, M = 360 rows -> 3 row tiles incl. a ragged last tile.
    channels, width, kernel_width = 8, 16, 4
    F = channels * width                          # 128
    T, N = 48, 8

    key = jax.random.PRNGKey(0)
    kp, kx = jax.random.split(key)
    params = init_params(kp, channels, width, kernel_width)
    prep = prepare_params(params, width)          # one-time weight folding (hoisted)
    x = jax.random.normal(kx, (T, N, F), jnp.float32)

    ref = ref_tds_conv2d_block(x, params, channels, width, kernel_width)
    ref_mp = ref_matched_precision(x, prep, channels, width, kernel_width)

    # (1) Multi-tile path with a ragged final tile (tile_m=128 -> 3 grid steps).
    fwd_small = jax.jit(functools.partial(
        tds_conv2d_block_apply, channels=channels, width=width,
        kernel_width=kernel_width, tile_m=128))
    out = jax.block_until_ready(fwd_small(x, prep))
    assert out.shape == ref.shape, (out.shape, ref.shape)

    # (2) Single-tile path with the default (large) tile size.
    fwd_big = jax.jit(functools.partial(
        tds_conv2d_block_apply, channels=channels, width=width,
        kernel_width=kernel_width))
    out_big = jax.block_until_ready(fwd_big(x, prep))

    for name, o in (("multi-tile", out), ("single-tile", out_big)):
        if not jnp.allclose(o, ref_mp, atol=2e-3, rtol=2e-3):
            raise AssertionError(
                f"{name}: kernel vs matched-precision ref mismatch, "
                f"max abs err = {jnp.max(jnp.abs(o - ref_mp))}")
        if not jnp.allclose(o, ref, atol=5e-2, rtol=5e-2):
            raise AssertionError(
                f"{name}: kernel vs f32 ref mismatch, "
                f"max abs err = {jnp.max(jnp.abs(o - ref))}")

    print("KERNEL_OK")
</pallas_src>

<mosaic_0001>
module attributes {stable_mosaic.version = 11 : i64} {
  func.func @kernel(%arg0: i32, %arg1: memref<384x128xf32, #tpu.memory_space<any>>, %arg2: memref<4x128x128xbf16, #tpu.memory_space<vmem>>, %arg3: memref<1x128xf32, #tpu.memory_space<vmem>>, %arg4: memref<1x128xf32, #tpu.memory_space<vmem>>, %arg5: memref<1x128xf32, #tpu.memory_space<vmem>>, %arg6: memref<128x128xf32, #tpu.memory_space<vmem>>, %arg7: memref<352x128xf32, #tpu.memory_space<vmem>>, %arg8: memref<2x!tpu.dma_semaphore, #tpu.memory_space<semaphore_mem>>) attributes {dimension_semantics = [#tpu.dimension_semantics<arbitrary>], iteration_bounds = array<i64: 3>, scalar_prefetch = 0 : i64, scratch_operands = 2 : i64, tpu.core_type = #tpu.core_type<tc>, window_params = [{}, {pipeline_mode = #tpu.pipeline_mode<synchronous>, transform_indices = @transform_1, window_bounds = array<i64: 4, 128, 128>}, {pipeline_mode = #tpu.pipeline_mode<synchronous>, transform_indices = @transform_2, window_bounds = array<i64: 1, 128>}, {pipeline_mode = #tpu.pipeline_mode<synchronous>, transform_indices = @transform_3, window_bounds = array<i64: 1, 128>}, {pipeline_mode = #tpu.pipeline_mode<synchronous>, transform_indices = @transform_4, window_bounds = array<i64: 1, 128>}, {transform_indices = @transform_5, window_bounds = array<i64: 128, 128>}]} {
    %c0_i32 = arith.constant 0 : i32
    %0 = arith.cmpi eq, %arg0, %c0_i32 : i32
    %1 = arith.extui %0 : i1 to i32
    %c0_i32_0 = arith.constant 0 : i32
    %2 = arith.cmpi ne, %1, %c0_i32_0 : i32
    scf.if %2 {
      %c0_i32_40 = arith.constant 0 : i32
      %c232_i32_41 = arith.constant 232 : i32
      %87 = arith.minsi %c0_i32_40, %c232_i32_41 : i32
      %c0_i32_42 = arith.constant 0 : i32
      %c0_i32_43 = arith.constant 0 : i32
      %88 = tpu.memref_slice %arg1[%87, %c0_i32_43] : memref<384x128xf32, #tpu.memory_space<any>> -> memref<152x128xf32, #tpu.memory_space<any>>
      %c0_i32_44 = arith.constant 0 : i32
      %c0_i32_45 = arith.constant 0 : i32
      %89 = tpu.memref_slice %arg7[%c0_i32_44, %c0_i32_45] : memref<352x128xf32, #tpu.memory_space<vmem>> -> memref<152x128xf32, #tpu.memory_space<vmem>>
      %90 = tpu.memref_slice %arg8[%c0_i32_42] : memref<2x!tpu.dma_semaphore, #tpu.memory_space<semaphore_mem>> -> memref<1x!tpu.dma_semaphore, #tpu.memory_space<semaphore_mem>>
      %91 = tpu.memref_squeeze %90 : memref<1x!tpu.dma_semaphore, #tpu.memory_space<semaphore_mem>> -> memref<!tpu.dma_semaphore, #tpu.memory_space<semaphore_mem>>
      tpu.enqueue_dma source(%88 : memref<152x128xf32, #tpu.memory_space<any>>) target(%89 : memref<152x128xf32, #tpu.memory_space<vmem>>) target_semaphore(%91 : memref<!tpu.dma_semaphore, #tpu.memory_space<semaphore_mem>>)
    } else {
    }
    %c1_i32 = arith.constant 1 : i32
    %3 = arith.addi %arg0, %c1_i32 : i32
    %c3_i32 = arith.constant 3 : i32
    %4 = arith.cmpi slt, %3, %c3_i32 : i32
    %5 = arith.extui %4 : i1 to i32
    %c0_i32_1 = arith.constant 0 : i32
    %6 = arith.cmpi ne, %5, %c0_i32_1 : i32
    scf.if %6 {
      %c1_i32_40 = arith.constant 1 : i32
      %87 = arith.addi %arg0, %c1_i32_40 : i32
      %c1_i32_41 = arith.constant 1 : i32
      %88 = arith.addi %arg0, %c1_i32_41 : i32
      %c1_i32_42 = arith.constant 1 : i32
      %89 = arith.andi %88, %c1_i32_42 : i32
      %c128_i32_43 = arith.constant 128 : i32
      %90 = arith.muli %87, %c128_i32_43 : i32
      %c232_i32_44 = arith.constant 232 : i32
      %91 = arith.minsi %90, %c232_i32_44 : i32
      %c176_i32_45 = arith.constant 176 : i32
      %92 = arith.muli %89, %c176_i32_45 : i32
      %c0_i32_46 = arith.constant 0 : i32
      %93 = tpu.memref_slice %arg1[%91, %c0_i32_46] : memref<384x128xf32, #tpu.memory_space<any>> -> memref<152x128xf32, #tpu.memory_space<any>>
      %c0_i32_47 = arith.constant 0 : i32
      %94 = tpu.memref_slice %arg7[%92, %c0_i32_47] : memref<352x128xf32, #tpu.memory_space<vmem>> -> memref<152x128xf32, #tpu.memory_space<vmem>>
      %95 = tpu.memref_slice %arg8[%89] : memref<2x!tpu.dma_semaphore, #tpu.memory_space<semaphore_mem>> -> memref<1x!tpu.dma_semaphore, #tpu.memory_space<semaphore_mem>>
      %96 = tpu.memref_squeeze %95 : memref<1x!tpu.dma_semaphore, #tpu.memory_space<semaphore_mem>> -> memref<!tpu.dma_semaphore, #tpu.memory_space<semaphore_mem>>
      tpu.enqueue_dma source(%93 : memref<152x128xf32, #tpu.memory_space<any>>) target(%94 : memref<152x128xf32, #tpu.memory_space<vmem>>) target_semaphore(%96 : memref<!tpu.dma_semaphore, #tpu.memory_space<semaphore_mem>>)
    } else {
    }
    %c1_i32_2 = arith.constant 1 : i32
    %7 = arith.andi %arg0, %c1_i32_2 : i32
    %c128_i32 = arith.constant 128 : i32
    %8 = arith.muli %arg0, %c128_i32 : i32
    %c232_i32 = arith.constant 232 : i32
    %9 = arith.minsi %8, %c232_i32 : i32
    %c176_i32 = arith.constant 176 : i32
    %10 = arith.muli %7, %c176_i32 : i32
    %c0_i32_3 = arith.constant 0 : i32
    %11 = tpu.memref_slice %arg1[%9, %c0_i32_3] : memref<384x128xf32, #tpu.memory_space<any>> -> memref<152x128xf32, #tpu.memory_space<any>>
    %c0_i32_4 = arith.constant 0 : i32
    %12 = tpu.memref_slice %arg7[%10, %c0_i32_4] : memref<352x128xf32, #tpu.memory_space<vmem>> -> memref<152x128xf32, #tpu.memory_space<vmem>>
    %13 = tpu.memref_slice %arg8[%7] : memref<2x!tpu.dma_semaphore, #tpu.memory_space<semaphore_mem>> -> memref<1x!tpu.dma_semaphore, #tpu.memory_space<semaphore_mem>>
    %14 = tpu.memref_squeeze %13 : memref<1x!tpu.dma_semaphore, #tpu.memory_space<semaphore_mem>> -> memref<!tpu.dma_semaphore, #tpu.memory_space<semaphore_mem>>
    tpu.wait_dma2 semaphore(%14 : memref<!tpu.dma_semaphore, #tpu.memory_space<semaphore_mem>>) src(%11 : memref<152x128xf32, #tpu.memory_space<any>>) dst(%12 : memref<152x128xf32, #tpu.memory_space<vmem>>)
    %c128_i32_5 = arith.constant 128 : i32
    %15 = arith.muli %arg0, %c128_i32_5 : i32
    %c128_i32_6 = arith.constant 128 : i32
    %16 = arith.muli %arg0, %c128_i32_6 : i32
    %c232_i32_7 = arith.constant 232 : i32
    %17 = arith.minsi %16, %c232_i32_7 : i32
    %18 = arith.subi %15, %17 : i32
    %c176_i32_8 = arith.constant 176 : i32
    %19 = arith.muli %7, %c176_i32_8 : i32
    %20 = arith.addi %19, %18 : i32
    %cst = arith.constant 0.000000e+00 : f32
    %21 = vector.broadcast %cst : f32 to vector<128x128xf32>
    %c0_i32_9 = arith.constant 0 : i32
    %22 = arith.addi %20, %c0_i32_9 : i32
    %23 = tpu.assume_multiple %22, 8 : i32
    %24 = arith.index_cast %23 : i32 to index
    %c0 = arith.constant 0 : index
    %25 = vector.load %arg7[%24, %c0] : memref<352x128xf32, #tpu.memory_space<vmem>>, vector<128x128xf32>
    %26 = arith.truncf %25 : vector<128x128xf32> to vector<128x128xbf16>
    %c0_10 = arith.constant 0 : index
    %c0_11 = arith.constant 0 : index
    %c0_12 = arith.constant 0 : index
    %27 = vector.load %arg2[%c0_10, %c0_11, %c0_12] : memref<4x128x128xbf16, #tpu.memory_space<vmem>>, vector<1x128x128xbf16>
    %28 = vector.shape_cast %27 : vector<1x128x128xbf16> to vector<128x128xbf16>
    %cst_13 = arith.constant dense<0.000000e+00> : vector<128x128xf32>
    %29 = tpu.matmul %26, %28, %cst_13 {dimension_numbers = #tpu.dot_dimension_numbers<[1], [0], [0], [1], [0, 0, 1, 1], [], []>} : vector<128x128xbf16>, vector<128x128xbf16>, vector<128x128xf32> -> vector<128x128xf32>
    %30 = arith.addf %21, %29 : vector<128x128xf32>
    %c8_i32 = arith.constant 8 : i32
    %31 = arith.addi %20, %c8_i32 : i32
    %32 = tpu.assume_multiple %31, 8 : i32
    %33 = arith.index_cast %32 : i32 to index
    %c0_14 = arith.constant 0 : index
    %34 = vector.load %arg7[%33, %c0_14] : memref<352x128xf32, #tpu.memory_space<vmem>>, vector<128x128xf32>
    %35 = arith.truncf %34 : vector<128x128xf32> to vector<128x128xbf16>
    %c1 = arith.constant 1 : index
    %c0_15 = arith.constant 0 : index
    %c0_16 = arith.constant 0 : index
    %36 = vector.load %arg2[%c1, %c0_15, %c0_16] : memref<4x128x128xbf16, #tpu.memory_space<vmem>>, vector<1x128x128xbf16>
    %37 = vector.shape_cast %36 : vector<1x128x128xbf16> to vector<128x128xbf16>
    %cst_17 = arith.constant dense<0.000000e+00> : vector<128x128xf32>
    %38 = tpu.matmul %35, %37, %cst_17 {dimension_numbers = #tpu.dot_dimension_numbers<[1], [0], [0], [1], [0, 0, 1, 1], [], []>} : vector<128x128xbf16>, vector<128x128xbf16>, vector<128x128xf32> -> vector<128x128xf32>
    %39 = arith.addf %30, %38 : vector<128x128xf32>
    %c16_i32 = arith.constant 16 : i32
    %40 = arith.addi %20, %c16_i32 : i32
    %41 = tpu.assume_multiple %40, 8 : i32
    %42 = arith.index_cast %41 : i32 to index
    %c0_18 = arith.constant 0 : index
    %43 = vector.load %arg7[%42, %c0_18] : memref<352x128xf32, #tpu.memory_space<vmem>>, vector<128x128xf32>
    %44 = arith.truncf %43 : vector<128x128xf32> to vector<128x128xbf16>
    %c2 = arith.constant 2 : index
    %c0_19 = arith.constant 0 : index
    %c0_20 = arith.constant 0 : index
    %45 = vector.load %arg2[%c2, %c0_19, %c0_20] : memref<4x128x128xbf16, #tpu.memory_space<vmem>>, vector<1x128x128xbf16>
    %46 = vector.shape_cast %45 : vector<1x128x128xbf16> to vector<128x128xbf16>
    %cst_21 = arith.constant dense<0.000000e+00> : vector<128x128xf32>
    %47 = tpu.matmul %44, %46, %cst_21 {dimension_numbers = #tpu.dot_dimension_numbers<[1], [0], [0], [1], [0, 0, 1, 1], [], []>} : vector<128x128xbf16>, vector<128x128xbf16>, vector<128x128xf32> -> vector<128x128xf32>
    %48 = arith.addf %39, %47 : vector<128x128xf32>
    %c24_i32 = arith.constant 24 : i32
    %49 = arith.addi %20, %c24_i32 : i32
    %50 = tpu.assume_multiple %49, 8 : i32
    %51 = arith.index_cast %50 : i32 to index
    %c0_22 = arith.constant 0 : index
    %52 = vector.load %arg7[%51, %c0_22] : memref<352x128xf32, #tpu.memory_space<vmem>>, vector<128x128xf32>
    %53 = arith.truncf %52 : vector<128x128xf32> to vector<128x128xbf16>
    %c3 = arith.constant 3 : index
    %c0_23 = arith.constant 0 : index
    %c0_24 = arith.constant 0 : index
    %54 = vector.load %arg2[%c3, %c0_23, %c0_24] : memref<4x128x128xbf16, #tpu.memory_space<vmem>>, vector<1x128x128xbf16>
    %55 = vector.shape_cast %54 : vector<1x128x128xbf16> to vector<128x128xbf16>
    %cst_25 = arith.constant dense<0.000000e+00> : vector<128x128xf32>
    %56 = tpu.matmul %53, %55, %cst_25 {dimension_numbers = #tpu.dot_dimension_numbers<[1], [0], [0], [1], [0, 0, 1, 1], [], []>} : vector<128x128xbf16>, vector<128x128xbf16>, vector<128x128xf32> -> vector<128x128xf32>
    %57 = arith.addf %48, %56 : vector<128x128xf32>
    %c0_26 = arith.constant 0 : index
    %c0_27 = arith.constant 0 : index
    %58 = vector.load %arg3[%c0_26, %c0_27] : memref<1x128xf32, #tpu.memory_space<vmem>>, vector<1x128xf32>
    %59 = vector.broadcast %58 : vector<1x128xf32> to vector<128x128xf32>
    %60 = arith.addf %57, %59 : vector<128x128xf32>
    %cst_28 = arith.constant 0.000000e+00 : f32
    %61 = vector.broadcast %cst_28 : f32 to vector<128x128xf32>
    %62 = arith.maximumf %60, %61 : vector<128x128xf32>
    %63 = arith.addf %62, %52 : vector<128x128xf32>
    %cst_29 = arith.constant dense<0.000000e+00> : vector<128xf32>
    %64 = vector.multi_reduction <add>, %63, %cst_29 [1] : vector<128x128xf32> to vector<128xf32>
    %65 = vector.shape_cast %64 : vector<128xf32> to vector<128x1xf32>
    %cst_30 = arith.constant 7.812500e-03 : f32
    %66 = vector.broadcast %cst_30 : f32 to vector<128x1xf32>
    %67 = arith.mulf %65, %66 : vector<128x1xf32>
    %68 = vector.broadcast %67 : vector<128x1xf32> to vector<128x128xf32>
    %69 = arith.subf %63, %68 : vector<128x128xf32>
    %70 = arith.mulf %69, %69 : vector<128x128xf32>
    %cst_31 = arith.constant dense<0.000000e+00> : vector<128xf32>
    %71 = vector.multi_reduction <add>, %70, %cst_31 [1] : vector<128x128xf32> to vector<128xf32>
    %72 = vector.shape_cast %71 : vector<128xf32> to vector<128x1xf32>
    %cst_32 = arith.constant 7.812500e-03 : f32
    %73 = vector.broadcast %cst_32 : f32 to vector<128x1xf32>
    %74 = arith.mulf %72, %73 : vector<128x1xf32>
    %cst_33 = arith.constant 9.99999974E-6 : f32
    %75 = vector.broadcast %cst_33 : f32 to vector<128x1xf32>
    %76 = arith.addf %74, %75 : vector<128x1xf32>
    %77 = math.rsqrt %76 : vector<128x1xf32>
    %78 = vector.broadcast %77 : vector<128x1xf32> to vector<128x128xf32>
    %79 = arith.mulf %69, %78 : vector<128x128xf32>
    %c0_34 = arith.constant 0 : index
    %c0_35 = arith.constant 0 : index
    %80 = vector.load %arg4[%c0_34, %c0_35] : memref<1x128xf32, #tpu.memory_space<vmem>>, vector<1x128xf32>
    %81 = vector.broadcast %80 : vector<1x128xf32> to vector<128x128xf32>
    %82 = arith.mulf %79, %81 : vector<128x128xf32>
    %c0_36 = arith.constant 0 : index
    %c0_37 = arith.constant 0 : index
    %83 = vector.load %arg5[%c0_36, %c0_37] : memref<1x128xf32, #tpu.memory_space<vmem>>, vector<1x128xf32>
    %84 = vector.broadcast %83 : vector<1x128xf32> to vector<128x128xf32>
    %85 = arith.addf %82, %84 : vector<128x128xf32>
    %c0_38 = arith.constant 0 : index
    %c0_39 = arith.constant 0 : index
    %86 = vector.load %arg6[%c0_38, %c0_39] : memref<128x128xf32, #tpu.memory_space<vmem>>, vector<128x128xf32>
    tpu.vector_store %arg6[%c0_38, %c0_39], %85 {strides = array<i32>} : memref<128x128xf32, #tpu.memory_space<vmem>>, vector<128x128xf32>,
    return
  }
  func.func @transform_1(%arg0: i32) -> (i32, i32, i32) {
    %c0_i32 = arith.constant 0 : i32
    %c0_i32_0 = arith.constant 0 : i32
    %c0_i32_1 = arith.constant 0 : i32
    %c0_i32_2 = arith.constant 0 : i32
    return %c0_i32, %c0_i32_0, %c0_i32_1 : i32, i32, i32
  }
  func.func @transform_2(%arg0: i32) -> (i32, i32) {
    %c0_i32 = arith.constant 0 : i32
    %c0_i32_0 = arith.constant 0 : i32
    %c0_i32_1 = arith.constant 0 : i32
    return %c0_i32, %c0_i32_0 : i32, i32
  }
  func.func @transform_3(%arg0: i32) -> (i32, i32) {
    %c0_i32 = arith.constant 0 : i32
    %c0_i32_0 = arith.constant 0 : i32
    %c0_i32_1 = arith.constant 0 : i32
    return %c0_i32, %c0_i32_0 : i32, i32
  }
  func.func @transform_4(%arg0: i32) -> (i32, i32) {
    %c0_i32 = arith.constant 0 : i32
    %c0_i32_0 = arith.constant 0 : i32
    %c0_i32_1 = arith.constant 0 : i32
    return %c0_i32, %c0_i32_0 : i32, i32
  }
  func.func @transform_5(%arg0: i32) -> (i32, i32) {
    %c0_i32 = arith.constant 0 : i32
    %c0_i32_0 = arith.constant 0 : i32
    return %arg0, %c0_i32 : i32, i32
  }
}

</mosaic_0001>

<llo_original>
// kernel: tds_conv2d_block_apply.1
$region0: #{tds_conv2d_block_apply.1}
  #allocation0 [shape = 'u32[]', space=smem, size = 0x4, offset = 0x4, fixed_abs, tag = 'smem constant byte address 0x4 - core index']
  #allocation1 [shape = 'u32[72,128]{1,0:T(1,128)}', space=vmem, size = 0x9000, scoped, tag = 'internal scratch']
  #allocation2 [shape = 'f32[352,128]{1,0:T(8,128)}', space=vmem, size = 0x2c000, scoped, tag = 'scratch operand']
  #allocation3 [shape = 's32[2]{0}', space=sflag, size = 0x8, scoped, tag = 'scratch operand']
  #allocation10 [shape = 's32[]', space=sflag, size = 0x4, offset = 0, fixed_abs, tag = 'sflag constant byte address 0x0 - dummy sync flag']
  #allocation11 [shape = 's32[]', space=sflag, size = 0x4, offset = 0, fixed_abs, tag = 'sflag constant byte address 0x0 - dummy sync flag']
  #allocation12 [shape = 'u32[]', space=smem, size = 0x4, offset = 0x44, fixed_abs, tag = 'smem constant byte address 0x44 - assertion arg 0']
  #allocation13 [shape = 'u32[]', space=smem, size = 0x4, offset = 0x48, fixed_abs, tag = 'smem constant byte address 0x48 - assertion arg 1']
  #allocation14 [shape = 's32[]', space=sflag, size = 0x4, offset = 0, fixed_abs, tag = 'sflag constant byte address 0x0 - dummy sync flag']
  #allocation15 [shape = 's32[]', space=sflag, size = 0x4, offset = 0, fixed_abs, tag = 'sflag constant byte address 0x0 - dummy sync flag']
  %s0 = inlined_call_operand.hbm [shape: f32[384,128], index: 0, kind: input, shape index: {}]
  %s1 = inlined_call_operand.hbm [shape: bf16[4,128,128], index: 1, kind: input, shape index: {}]
  %s2 = inlined_call_operand.vmem [shape: f32[1,128], index: 2, kind: input, shape index: {}]
  %s3 = inlined_call_operand.vmem [shape: f32[1,128], index: 3, kind: input, shape index: {}]
  %s4 = inlined_call_operand.hbm [shape: f32[1,128], index: 4, kind: input, shape index: {}]
  %s5 = inlined_call_operand.hbm [shape: f32[360,128], index: 5, kind: output, shape index: {}]
  %s6 = sld [smem:[#allocation0]]
  $region73: #{tds_conv2d_block_apply.1} parent=0
    _
  %s8 = ssub.s32 1, %s6
  %s9 = scalar_select 0, %s8, %s6
  $region1: #{tds_conv2d_block_apply.1} parent=0
    #allocation4 [shape = 'u8[131072]{0}', space=vmem, size = 0x20000, scoped, tag = 'input window, operand 1, single buffered']
    #allocation5 [shape = 's32[2]{0}', space=sflag, size = 0x8, scoped, tag = 'scoped memory for tds_conv2d_block_apply.1']
    #allocation6 [shape = 's32[2]{0}', space=sflag, size = 0x8, scoped, tag = 'scoped memory for tds_conv2d_block_apply.1']
    #allocation7 [shape = 'u8[512]{0}', space=vmem, size = 0x400, scoped, tag = 'input window, operand 4, single buffered']
    #allocation8 [shape = 's32[1]{0}', space=sflag, size = 0x4, scoped, tag = 'scoped memory for tds_conv2d_block_apply.1']
    #allocation9 [shape = 'u8[131072]{0}', space=vmem, size = 0x20000, scoped, tag = 'output window, operand 0']
    %10 = vsyncpa [#allocation5], 0
    %11 = vsyncpa [#allocation8], 0
    %12 = vsyncpa [#allocation6], 0
    %s13 = scalar_lea.sflag [#allocation6], 1
    %14 = vsyncpa %s13, 0
    loop: start=0, step=1, limit=5
    $region2: #{tds_conv2d_block_apply.1} parent=1 // loop_pre_header
      _
    $region3: #{tds_conv2d_block_apply.1} parent=1 // loop_header
      %s16 = sphi 0, %s20
      %p17 = scmp.ge.s32.totalorder %s16, 5
      %s24 = sphi 0, %s24
      %s26 = sphi 0, %s24
      %s27 = sphi 0, %s26
      %s41 = sphi 0, %s27
      %s45 = sphi 0, %s45
      %s47 = sphi 0, %s45
      %s48 = sphi 0, %s47
      %s62 = sphi 0, %s48
      %s66 = sphi 0, %s66
      %s68 = sphi 0, %s66
      %s69 = sphi 0, %s68
      %s83 = sphi 0, %s69
      %s87 = sphi 0, %s87
      %s89 = sphi 0, %s87
      %s90 = sphi 0, %s89
      %s104 = sphi 0, %s90
      %s110 = sphi 0, %s112
      %s113 = sphi 0, %s110
      %s114 = sphi 0, %s113
      %s130 = sphi 0, %s114
    $region4: #{tds_conv2d_block_apply.1} parent=1 // loop_header_branch
      %19 = sbr.rel (%p17) target = $region8
    $region5: #{tds_conv2d_block_apply.1} parent=1 // loop_body
      %s21 = ssub.s32 %s16, 1
      %s22 = ssub.s32 %s16, 2
      %s23 = sadd.s32 %s16, 1
      %s25 = sadd.s32 %s24, 1
      %p28 = scmp.eq.s32.totalorder %s16, 2
      %p29 = scmp.ne.s32.totalorder %s24, %s26
      %p30 = scmp.eq.s32.totalorder %s16, 0
      %p31 = por %p29, %p30
      %p32 = scmp.ne.s32.totalorder %s24, %s26
      %p33 = scmp.eq.s32.totalorder %s21, 2
      %p34 = por %p32, %p33
      %p35 = scmp.ne.s32.totalorder %s26, %s27
      %p36 = scmp.eq.s32.totalorder %s21, 0
      %p37 = por %p35, %p36
      %p38 = scmp.ne.s32.totalorder %s26, %s27
      %p39 = scmp.eq.s32.totalorder %s22, 2
      %p40 = por %p38, %p39
      %p42 = scmp.ne.s32.totalorder %s27, %s41
      %p43 = scmp.eq.s32.totalorder %s22, 0
      %p44 = por %p42, %p43
      %s46 = sadd.s32 %s45, 1
      %p49 = scmp.eq.s32.totalorder %s16, 2
      %p50 = scmp.ne.s32.totalorder %s45, %s47
      %p51 = scmp.eq.s32.totalorder %s16, 0
      %p52 = por %p50, %p51
      %p53 = scmp.ne.s32.totalorder %s45, %s47
      %p54 = scmp.eq.s32.totalorder %s21, 2
      %p55 = por %p53, %p54
      %p56 = scmp.ne.s32.totalorder %s47, %s48
      %p57 = scmp.eq.s32.totalorder %s21, 0
      %p58 = por %p56, %p57
      %p59 = scmp.ne.s32.totalorder %s47, %s48
      %p60 = scmp.eq.s32.totalorder %s22, 2
      %p61 = por %p59, %p60
      %p63 = scmp.ne.s32.totalorder %s48, %s62
      %p64 = scmp.eq.s32.totalorder %s22, 0
      %p65 = por %p63, %p64
      %s67 = sadd.s32 %s66, 1
      %p70 = scmp.eq.s32.totalorder %s16, 2
      %p71 = scmp.ne.s32.totalorder %s66, %s68
      %p72 = scmp.eq.s32.totalorder %s16, 0
      %p73 = por %p71, %p72
      %p74 = scmp.ne.s32.totalorder %s66, %s68
      %p75 = scmp.eq.s32.totalorder %s21, 2
      %p76 = por %p74, %p75
      %p77 = scmp.ne.s32.totalorder %s68, %s69
      %p78 = scmp.eq.s32.totalorder %s21, 0
      %p79 = por %p77, %p78
      %p80 = scmp.ne.s32.totalorder %s68, %s69
      %p81 = scmp.eq.s32.totalorder %s22, 2
      %p82 = por %p80, %p81
      %p84 = scmp.ne.s32.totalorder %s69, %s83
      %p85 = scmp.eq.s32.totalorder %s22, 0
      %p86 = por %p84, %p85
      %s88 = sadd.s32 %s87, 1
      %p91 = scmp.eq.s32.totalorder %s16, 2
      %p92 = scmp.ne.s32.totalorder %s87, %s89
      %p93 = scmp.eq.s32.totalorder %s16, 0
      %p94 = por %p92, %p93
      %p95 = scmp.ne.s32.totalorder %s87, %s89
      %p96 = scmp.eq.s32.totalorder %s21, 2
      %p97 = por %p95, %p96
      %p98 = scmp.ne.s32.totalorder %s89, %s90
      %p99 = scmp.eq.s32.totalorder %s21, 0
      %p100 = por %p98, %p99
      %p101 = scmp.ne.s32.totalorder %s89, %s90
      %p102 = scmp.eq.s32.totalorder %s22, 2
      %p103 = por %p101, %p102
      %p105 = scmp.ne.s32.totalorder %s90, %s104
      %p106 = scmp.eq.s32.totalorder %s22, 0
      %p107 = por %p105, %p106
      %s108 = ssub.s32 %s16, %s23
      %p109 = scmp.eq.s32.totalorder %s108, 0
      %s111 = sadd.s32 %s110, 1
      %s112 = scalar_select %p109, %s110, %s111
      %p115 = pneg %p109
      %p116 = scmp.eq.s32.totalorder %s16, 2
      %p117 = por %p115, %p116
      %p118 = scmp.ne.s32.totalorder %s110, %s113
      %p119 = scmp.eq.s32.totalorder %s16, 0
      %p120 = por %p118, %p119
      %p121 = scmp.ne.s32.totalorder %s110, %s113
      %p122 = scmp.eq.s32.totalorder %s21, 2
      %p123 = por %p121, %p122
      %p124 = scmp.ne.s32.totalorder %s113, %s114
      %p125 = scmp.eq.s32.totalorder %s21, 0
      %p126 = por %p124, %p125
      %p127 = scmp.ne.s32.totalorder %s113, %s114
      %p128 = scmp.eq.s32.totalorder %s22, 2
      %p129 = por %p127, %p128
      %p131 = scmp.ne.s32.totalorder %s114, %s130
      %p132 = scmp.eq.s32.totalorder %s22, 0
      %p133 = por %p131, %p132
      %p134 = scmp.le.s32.totalorder 1, %s16
      %p135 = scmp.lt.s32.totalorder %s16, 4
      %p136 = pnand %p134, %p135
      %p137 = pneg %p136
      // Predicated region
      $region9: #{tds_conv2d_block_apply.1} parent=5 // pred_check
        _
      $region10: #{tds_conv2d_block_apply.1} parent=5 // pred_check_branch
        %139 = sbr.rel (%p136) target = $region12
      $region11: #{tds_conv2d_block_apply.1} parent=5 // pred_region
        %s140 = ssub.s32 %s16, 1
        // Predicated region
        $region13: #{tds_conv2d_block_apply.1} parent=11 // pred_check
          %p141 = pneg %p37
        $region14: #{tds_conv2d_block_apply.1} parent=11 // pred_check_branch
          %143 = sbr.rel (%p141) target = $region16
        $region15: #{tds_conv2d_block_apply.1} parent=11 // pred_region
          %145 = vsyncadd [#allocation5], 0
          %s146 = sshll.u32 %s1, 4
          %s147 = int_to_ptr.hbm [resolvable:$true] %s146
          %s148 = sshll.u32 [#allocation4], 4
          %s149 = int_to_ptr.vmem [resolvable:$true] %s148
          %154 = dma.hbm_to_vmem [thread:$0]  %s147, 4096, %s149, [#allocation5], 64, 64, 4
        $region16: #{tds_conv2d_block_apply.1} parent=11 // pred_fallthru
          _
        // Predicated region
        $region17: #{tds_conv2d_block_apply.1} parent=11 // pred_check
          %p155 = pneg %p58
        $region18: #{tds_conv2d_block_apply.1} parent=11 // pred_check_branch
          %157 = sbr.rel (%p155) target = $region20
        $region19: #{tds_conv2d_block_apply.1} parent=11 // pred_region
          _
        $region20: #{tds_conv2d_block_apply.1} parent=11 // pred_fallthru
          _
        // Predicated region
        $region21: #{tds_conv2d_block_apply.1} parent=11 // pred_check
          %p158 = pneg %p79
        $region22: #{tds_conv2d_block_apply.1} parent=11 // pred_check_branch
          %160 = sbr.rel (%p158) target = $region24
        $region23: #{tds_conv2d_block_apply.1} parent=11 // pred_region
          _
        $region24: #{tds_conv2d_block_apply.1} parent=11 // pred_fallthru
          _
        // Predicated region
        $region25: #{tds_conv2d_block_apply.1} parent=11 // pred_check
          %p161 = pneg %p100
        $region26: #{tds_conv2d_block_apply.1} parent=11 // pred_check_branch
          %163 = sbr.rel (%p161) target = $region28
        $region27: #{tds_conv2d_block_apply.1} parent=11 // pred_region
          %165 = vsyncadd [#allocation8], 0
          %s167 = sshll.u32 %s4, 4
          %s168 = int_to_ptr.hbm [resolvable:$true] %s167
          %s169 = sshll.u32 [#allocation7], 4
          %s170 = int_to_ptr.vmem [resolvable:$true] %s169
          %172 = dma.hbm_to_vmem [thread:$0]  %s168, 16, %s170, [#allocation8]
        $region28: #{tds_conv2d_block_apply.1} parent=11 // pred_fallthru
          _
      $region12: #{tds_conv2d_block_apply.1} parent=5 // pred_fallthru
        _
      %p173 = scmp.lt.s32.totalorder %s16, 3
      // Predicated region
      $region29: #{tds_conv2d_block_apply.1} parent=5 // pred_check
        %p174 = pneg %p173
      $region30: #{tds_conv2d_block_apply.1} parent=5 // pred_check_branch
        %176 = sbr.rel (%p174) target = $region32
      $region31: #{tds_conv2d_block_apply.1} parent=5 // pred_region
        _
      $region32: #{tds_conv2d_block_apply.1} parent=5 // pred_fallthru
        _
      %p177 = scmp.le.s32.totalorder 1, %s16
      %p178 = scmp.lt.s32.totalorder %s16, 4
      %p179 = pnand %p177, %p178
      %p180 = pneg %p179
      // Predicated region
      $region33: #{tds_conv2d_block_apply.1} parent=5 // pred_check
        _
      $region34: #{tds_conv2d_block_apply.1} parent=5 // pred_check_branch
        %182 = sbr.rel (%p179) target = $region36
      $region35: #{tds_conv2d_block_apply.1} parent=5 // pred_region
        %s183 = ssub.s32 %s16, 1
        // Predicated region
        $region37: #{tds_conv2d_block_apply.1} parent=35 // pred_check
          %p184 = pneg %p37
        $region38: #{tds_conv2d_block_apply.1} parent=35 // pred_check_branch
          %186 = sbr.rel (%p184) target = $region40
        $region39: #{tds_conv2d_block_apply.1} parent=35 // pred_region
          %188 = dma.done [#allocation5], 4096
        $region40: #{tds_conv2d_block_apply.1} parent=35 // pred_fallthru
          _
        // Predicated region
        $region41: #{tds_conv2d_block_apply.1} parent=35 // pred_check
          %p189 = pneg %p100
        $region42: #{tds_conv2d_block_apply.1} parent=35 // pred_check_branch
          %191 = sbr.rel (%p189) target = $region44
        $region43: #{tds_conv2d_block_apply.1} parent=35 // pred_region
          %193 = dma.done [#allocation8], 16
        $region44: #{tds_conv2d_block_apply.1} parent=35 // pred_fallthru
          _
        %p194 = pneg %p37
        %p195 = pneg %p34
        %p196 = pneg %p58
        %p197 = pneg %p55
        %p198 = pneg %p79
        %p199 = pneg %p76
        %p200 = pneg %p100
        %p201 = pneg %p97
        %p202 = pneg %p126
        %p203 = pneg %p123
        %s204 = sand.u32 %s113, 1
        %s205 = scalar_lea.sflag [#allocation6], %s204
        %s206 = sand.u32 %s113, 1
        %s207 = smul.addr %s206, 128
        %s208 = scalar_lea.vmem [#allocation9], %s207
        %s209 = smul.u32 16, %s21
        %s210 = ssub.s32 45, %s209
        %p211 = scmp.lt.s32.totalorder %s210, 16
        %s212 = scalar_select %p211, %s210, 16
        %s213 = smul.u32 8, %s212
        %p214 = scmp.eq.s32.totalorder %s21, 0
        // Predicated region
        $region45: #{tds_conv2d_block_apply.1} parent=35 // pred_check
          %p215 = pneg %p214
        $region46: #{tds_conv2d_block_apply.1} parent=35 // pred_check_branch
          %217 = sbr.rel (%p215) target = $region48
        $region47: #{tds_conv2d_block_apply.1} parent=35 // pred_region
          // Predicated region
          $region49: #{tds_conv2d_block_apply.1} parent=47 // pred_check
            _
          $region50: #{tds_conv2d_block_apply.1} parent=47 // pred_check_branch
            %219 = sbr.rel target = $region52
          $region51: #{tds_conv2d_block_apply.1} parent=47 // pred_region
            %220 = sst [smem:[#allocation12]] [#allocation11]
            %221 = sst [smem:[#allocation13]] [#allocation10]
          $region52: #{tds_conv2d_block_apply.1} parent=47 // pred_fallthru
            _
          %223 = shalt.err (0)
          %s225 = sshll.u32 %s0, 4
          %s226 = int_to_ptr.hbm [resolvable:$true] %s225
          %s227 = sshll.u32 [#allocation2], 4
          %s228 = int_to_ptr.vmem [resolvable:$true] %s227
          %230 = dma.hbm_to_vmem [thread:$0]  %s226, 2432, %s228, [#allocation3]
        $region48: #{tds_conv2d_block_apply.1} parent=35 // pred_fallthru
          _
        %s231 = sadd.s32 %s21, 1
        %p232 = scmp.lt.s32.totalorder %s231, 3
        // Predicated region
        $region53: #{tds_conv2d_block_apply.1} parent=35 // pred_check
          %p233 = pneg %p232
        $region54: #{tds_conv2d_block_apply.1} parent=35 // pred_check_branch
          %235 = sbr.rel (%p233) target = $region56
        $region55: #{tds_conv2d_block_apply.1} parent=35 // pred_region
          %s236 = sand.u32 %s231, 1
          %s237 = smul.u32 %s231, 128
          %p238 = scmp.lt.s32.totalorder %s237, 232
          %s239 = scalar_select %p238, %s237, 232
          %s240 = smul.u32 %s236, 176
          %s241 = scalar_lea.hbm %s0, %s239
          %s242 = scalar_lea.vmem [#allocation2], %s240
          %s243 = scalar_lea.sflag [#allocation3], %s236
          // Predicated region
          $region57: #{tds_conv2d_block_apply.1} parent=55 // pred_check
            _
          $region58: #{tds_conv2d_block_apply.1} parent=55 // pred_check_branch
            %245 = sbr.rel target = $region60
          $region59: #{tds_conv2d_block_apply.1} parent=55 // pred_region
            %246 = sst [smem:[#allocation12]] [#allocation15]
            %247 = sst [smem:[#allocation13]] [#allocation14]
          $region60: #{tds_conv2d_block_apply.1} parent=55 // pred_fallthru
            _
          %249 = shalt.err (0)
          %s251 = sshll.u32 %s241, 4
          %s252 = int_to_ptr.hbm [resolvable:$true] %s251
          %s253 = sshll.u32 %s242, 4
          %s254 = int_to_ptr.vmem [resolvable:$true] %s253
          %256 = dma.hbm_to_vmem [thread:$0]  %s252, 2432, %s254, %s243
        $region56: #{tds_conv2d_block_apply.1} parent=35 // pred_fallthru
          _
        %s257 = sand.u32 %s21, 1
        %s258 = smul.u32 %s21, 128
        %p259 = scmp.lt.s32.totalorder %s258, 232
        %s260 = scalar_select %p259, %s258, 232
        %s261 = smul.u32 %s257, 176
        %s262 = scalar_lea.sflag [#allocation3], %s257
        %s263 = smul.u32 152, 1
        %s264 = sshll.u32 %s263, 4
        %265 = dma.done %s262, %s264
        %s266 = ssub.s32 %s258, %s260
        %s267 = sadd.s32 %s261, %s266
        %s268 = scalar_lea.vmem [#allocation2], %s267
        %v269 = vld [vmem:[%s268] sm:$0xff]
        %v270 = vld [vmem:[%s268 + $0x8] sm:$0xff]
        %v271 = vld [vmem:[%s268 + $0x10] sm:$0xff]
        %v272 = vld [vmem:[%s268 + $0x18] sm:$0xff]
        %v273 = vld [vmem:[%s268 + $0x20] sm:$0xff]
        %v274 = vld [vmem:[%s268 + $0x28] sm:$0xff]
        %v275 = vld [vmem:[%s268 + $0x30] sm:$0xff]
        %v276 = vld [vmem:[%s268 + $0x38] sm:$0xff]
        %v277 = vld [vmem:[%s268 + $0x40] sm:$0xff]
        %v278 = vld [vmem:[%s268 + $0x48] sm:$0xff]
        %v279 = vld [vmem:[%s268 + $0x50] sm:$0xff]
        %v280 = vld [vmem:[%s268 + $0x58] sm:$0xff]
        %v281 = vld [vmem:[%s268 + $0x60] sm:$0xff]
        %v282 = vld [vmem:[%s268 + $0x68] sm:$0xff]
        %v283 = vld [vmem:[%s268 + $0x70] sm:$0xff]
        %v284 = vld [vmem:[%s268 + $0x78] sm:$0xff]
        %v285 = vpack.c.bf16 %v270, %v269
        %v286 = vpack.c.bf16 %v272, %v271
        %v287 = vpack.c.bf16 %v274, %v273
        %v288 = vpack.c.bf16 %v276, %v275
        %v289 = vpack.c.bf16 %v278, %v277
        %v290 = vpack.c.bf16 %v280, %v279
        %v291 = vpack.c.bf16 %v282, %v281
        %v292 = vpack.c.bf16 %v284, %v283
        %v293 = vld [vmem:[#allocation4] sm:$0xf]
        %v294 = vld [vmem:[#allocation4 + $0x4] sm:$0xf]
        %v295 = vld [vmem:[#allocation4 + $0x8] sm:$0xf]
        %v296 = vld [vmem:[#allocation4 + $0xc] sm:$0xf]
        %v297 = vld [vmem:[#allocation4 + $0x10] sm:$0xf]
        %v298 = vld [vmem:[#allocation4 + $0x14] sm:$0xf]
        %v299 = vld [vmem:[#allocation4 + $0x18] sm:$0xf]
        %v300 = vld [vmem:[#allocation4 + $0x1c] sm:$0xf]
        %v301 = vld [vmem:[#allocation4 + $0x20] sm:$0xf]
        %v302 = vld [vmem:[#allocation4 + $0x24] sm:$0xf]
        %v303 = vld [vmem:[#allocation4 + $0x28] sm:$0xf]
        %v304 = vld [vmem:[#allocation4 + $0x2c] sm:$0xf]
        %v305 = vld [vmem:[#allocation4 + $0x30] sm:$0xf]
        %v306 = vld [vmem:[#allocation4 + $0x34] sm:$0xf]
        %v307 = vld [vmem:[#allocation4 + $0x38] sm:$0xf]
        %v308 = vld [vmem:[#allocation4 + $0x3c] sm:$0xf]
        %s309 = sadd.s32 %s267, 8
        %s310 = scalar_lea.vmem [#allocation2], %s309
        %v311 = vld [vmem:[%s310] sm:$0xff]
        %v312 = vld [vmem:[%s310 + $0x8] sm:$0xff]
        %v313 = vld [vmem:[%s310 + $0x10] sm:$0xff]
        %v314 = vld [vmem:[%s310 + $0x18] sm:$0xff]
        %v315 = vld [vmem:[%s310 + $0x20] sm:$0xff]
        %v316 = vld [vmem:[%s310 + $0x28] sm:$0xff]
        %v317 = vld [vmem:[%s310 + $0x30] sm:$0xff]
        %v318 = vld [vmem:[%s310 + $0x38] sm:$0xff]
        %v319 = vld [vmem:[%s310 + $0x40] sm:$0xff]
        %v320 = vld [vmem:[%s310 + $0x48] sm:$0xff]
        %v321 = vld [vmem:[%s310 + $0x50] sm:$0xff]
        %v322 = vld [vmem:[%s310 + $0x58] sm:$0xff]
        %v323 = vld [vmem:[%s310 + $0x60] sm:$0xff]
        %v324 = vld [vmem:[%s310 + $0x68] sm:$0xff]
        %v325 = vld [vmem:[%s310 + $0x70] sm:$0xff]
        %v326 = vld [vmem:[%s310 + $0x78] sm:$0xff]
        %v327 = vpack.c.bf16 %v312, %v311
        %v328 = vpack.c.bf16 %v314, %v313
        %v329 = vpack.c.bf16 %v316, %v315
        %v330 = vpack.c.bf16 %v318, %v317
        %v331 = vpack.c.bf16 %v320, %v319
        %v332 = vpack.c.bf16 %v322, %v321
        %v333 = vpack.c.bf16 %v324, %v323
        %v334 = vpack.c.bf16 %v326, %v325
        %s335 = scalar_lea.vmem [#allocation4], 64
        %v336 = vld [vmem:[%s335] sm:$0xf]
        %v337 = vld [vmem:[%s335 + $0x4] sm:$0xf]
        %v338 = vld [vmem:[%s335 + $0x8] sm:$0xf]
        %v339 = vld [vmem:[%s335 + $0xc] sm:$0xf]
        %v340 = vld [vmem:[%s335 + $0x10] sm:$0xf]
        %v341 = vld [vmem:[%s335 + $0x14] sm:$0xf]
        %v342 = vld [vmem:[%s335 + $0x18] sm:$0xf]
        %v343 = vld [vmem:[%s335 + $0x1c] sm:$0xf]
        %v344 = vld [vmem:[%s335 + $0x20] sm:$0xf]
        %v345 = vld [vmem:[%s335 + $0x24] sm:$0xf]
        %v346 = vld [vmem:[%s335 + $0x28] sm:$0xf]
        %v347 = vld [vmem:[%s335 + $0x2c] sm:$0xf]
        %v348 = vld [vmem:[%s335 + $0x30] sm:$0xf]
        %v349 = vld [vmem:[%s335 + $0x34] sm:$0xf]
        %v350 = vld [vmem:[%s335 + $0x38] sm:$0xf]
        %v351 = vld [vmem:[%s335 + $0x3c] sm:$0xf]
        %v368 = vunpack.c.l.b16 %v336
        %v369 = vunpack.c.l.b16 %v337
        %v370 = vunpack.c.l.b16 %v338
        %v371 = vunpack.c.l.b16 %v339
        %v372 = vunpack.c.l.b16 %v340
        %v373 = vunpack.c.l.b16 %v341
        %v374 = vunpack.c.l.b16 %v342
        %v375 = vunpack.c.l.b16 %v343
        %v376 = vunpack.c.l.b16 %v344
        %v377 = vunpack.c.l.b16 %v345
        %v378 = vunpack.c.l.b16 %v346
        %v379 = vunpack.c.l.b16 %v347
        %v380 = vunpack.c.l.b16 %v348
        %v381 = vunpack.c.l.b16 %v349
        %v382 = vunpack.c.l.b16 %v350
        %v383 = vunpack.c.l.b16 %v351
        %v384 = vpack.c.b16 %v369, %v368
        %v385 = vpack.c.b16 %v371, %v370
        %v386 = vpack.c.b16 %v373, %v372
        %v387 = vpack.c.b16 %v375, %v374
        %v388 = vpack.c.b16 %v377, %v376
        %v389 = vpack.c.b16 %v379, %v378
        %v390 = vpack.c.b16 %v381, %v380
        %v391 = vpack.c.b16 %v383, %v382
        %400 = vmatpush.bf16.msra.mxu0 %v391
        %401 = vmatpush.bf16.msra.mxu0 %v390
        %402 = vmatpush.bf16.msra.mxu0 %v389
        %403 = vmatpush.bf16.msra.mxu0 %v388
        %404 = vmatpush.bf16.msra.mxu0 %v387
        %405 = vmatpush.bf16.msra.mxu0 %v386
        %406 = vmatpush.bf16.msra.mxu0 %v385
        %407 = vmatpush.bf16.msra.mxu0 %v384
        %408 = vmatmul.bf16.gmra.mxu0 %v327
        %v409 = vpop.f32.mrf.mxu0
        %v410 = vadd.f32 0.0, %v409
        %v411 = vpop.f32.mrf.mxu0
        %v412 = vadd.f32 0.0, %v411
        %413 = vmatmul.bf16.gmra.mxu0 %v328
        %v414 = vpop.f32.mrf.mxu0
        %v415 = vadd.f32 0.0, %v414
        %v416 = vpop.f32.mrf.mxu0
        %v417 = vadd.f32 0.0, %v416
        %418 = vmatmul.bf16.gmra.mxu0 %v329
        %v419 = vpop.f32.mrf.mxu0
        %v420 = vadd.f32 0.0, %v419
        %v421 = vpop.f32.mrf.mxu0
        %v422 = vadd.f32 0.0, %v421
        %423 = vmatmul.bf16.gmra.mxu0 %v330
        %v424 = vpop.f32.mrf.mxu0
        %v425 = vadd.f32 0.0, %v424
        %v426 = vpop.f32.mrf.mxu0
        %v427 = vadd.f32 0.0, %v426
        %428 = vmatmul.bf16.gmra.mxu0 %v331
        %v429 = vpop.f32.mrf.mxu0
        %v430 = vadd.f32 0.0, %v429
        %v431 = vpop.f32.mrf.mxu0
        %v432 = vadd.f32 0.0, %v431
        %433 = vmatmul.bf16.gmra.mxu0 %v332
        %v434 = vpop.f32.mrf.mxu0
        %v435 = vadd.f32 0.0, %v434
        %v436 = vpop.f32.mrf.mxu0
        %v437 = vadd.f32 0.0, %v436
        %438 = vmatmul.bf16.gmra.mxu0 %v333
        %v439 = vpop.f32.mrf.mxu0
        %v440 = vadd.f32 0.0, %v439
        %v441 = vpop.f32.mrf.mxu0
        %v442 = vadd.f32 0.0, %v441
        %443 = vmatmul.bf16.gmra.mxu0 %v334
        %v444 = vpop.f32.mrf.mxu0
        %v445 = vadd.f32 0.0, %v444
        %v446 = vpop.f32.mrf.mxu0
        %v447 = vadd.f32 0.0, %v446
        %448 = vdwg.mxu0
        %v465 = vunpack.c.l.b16 %v293
        %v466 = vunpack.c.l.b16 %v294
        %v467 = vunpack.c.l.b16 %v295
        %v468 = vunpack.c.l.b16 %v296
        %v469 = vunpack.c.l.b16 %v297
        %v470 = vunpack.c.l.b16 %v298
        %v471 = vunpack.c.l.b16 %v299
        %v472 = vunpack.c.l.b16 %v300
        %v473 = vunpack.c.l.b16 %v301
        %v474 = vunpack.c.l.b16 %v302
        %v475 = vunpack.c.l.b16 %v303
        %v476 = vunpack.c.l.b16 %v304
        %v477 = vunpack.c.l.b16 %v305
        %v478 = vunpack.c.l.b16 %v306
        %v479 = vunpack.c.l.b16 %v307
        %v480 = vunpack.c.l.b16 %v308
        %v481 = vpack.c.b16 %v466, %v465
        %v482 = vpack.c.b16 %v468, %v467
        %v483 = vpack.c.b16 %v470, %v469
        %v484 = vpack.c.b16 %v472, %v471
        %v485 = vpack.c.b16 %v474, %v473
        %v486 = vpack.c.b16 %v476, %v475
        %v487 = vpack.c.b16 %v478, %v477
        %v488 = vpack.c.b16 %v480, %v479
        %497 = vmatpush.bf16.msra.mxu0 %v488
        %498 = vmatpush.bf16.msra.mxu0 %v487
        %499 = vmatpush.bf16.msra.mxu0 %v486
        %500 = vmatpush.bf16.msra.mxu0 %v485
        %501 = vmatpush.bf16.msra.mxu0 %v484
        %502 = vmatpush.bf16.msra.mxu0 %v483
        %503 = vmatpush.bf16.msra.mxu0 %v482
        %504 = vmatpush.bf16.msra.mxu0 %v481
        %505 = vmatmul.bf16.gmra.mxu0 %v285
        %v506 = vpop.f32.mrf.mxu0
        %v507 = vadd.f32 %v410, %v506
        %v508 = vpop.f32.mrf.mxu0
        %v509 = vadd.f32 %v412, %v508
        %510 = vmatmul.bf16.gmra.mxu0 %v286
        %v511 = vpop.f32.mrf.mxu0
        %v512 = vadd.f32 %v415, %v511
        %v513 = vpop.f32.mrf.mxu0
        %v514 = vadd.f32 %v417, %v513
        %515 = vmatmul.bf16.gmra.mxu0 %v287
        %v516 = vpop.f32.mrf.mxu0
        %v517 = vadd.f32 %v420, %v516
        %v518 = vpop.f32.mrf.mxu0
        %v519 = vadd.f32 %v422, %v518
        %520 = vmatmul.bf16.gmra.mxu0 %v288
        %v521 = vpop.f32.mrf.mxu0
        %v522 = vadd.f32 %v425, %v521
        %v523 = vpop.f32.mrf.mxu0
        %v524 = vadd.f32 %v427, %v523
        %525 = vmatmul.bf16.gmra.mxu0 %v289
        %v526 = vpop.f32.mrf.mxu0
        %v527 = vadd.f32 %v430, %v526
        %v528 = vpop.f32.mrf.mxu0
        %v529 = vadd.f32 %v432, %v528
        %530 = vmatmul.bf16.gmra.mxu0 %v290
        %v531 = vpop.f32.mrf.mxu0
        %v532 = vadd.f32 %v435, %v531
        %v533 = vpop.f32.mrf.mxu0
        %v534 = vadd.f32 %v437, %v533
        %535 = vmatmul.bf16.gmra.mxu0 %v291
        %v536 = vpop.f32.mrf.mxu0
        %v537 = vadd.f32 %v440, %v536
        %v538 = vpop.f32.mrf.mxu0
        %v539 = vadd.f32 %v442, %v538
        %540 = vmatmul.bf16.gmra.mxu0 %v292
        %v541 = vpop.f32.mrf.mxu0
        %v542 = vadd.f32 %v445, %v541
        %v543 = vpop.f32.mrf.mxu0
        %v544 = vadd.f32 %v447, %v543
        %545 = vdwg.mxu0
        %s546 = sadd.s32 %s267, 16
        %s547 = scalar_lea.vmem [#allocation2], %s546
        %v548 = vld [vmem:[%s547] sm:$0xff]
        %v549 = vld [vmem:[%s547 + $0x8] sm:$0xff]
        %v550 = vld [vmem:[%s547 + $0x10] sm:$0xff]
        %v551 = vld [vmem:[%s547 + $0x18] sm:$0xff]
        %v552 = vld [vmem:[%s547 + $0x20] sm:$0xff]
        %v553 = vld [vmem:[%s547 + $0x28] sm:$0xff]
        %v554 = vld [vmem:[%s547 + $0x30] sm:$0xff]
        %v555 = vld [vmem:[%s547 + $0x38] sm:$0xff]
        %v556 = vld [vmem:[%s547 + $0x40] sm:$0xff]
        %v557 = vld [vmem:[%s547 + $0x48] sm:$0xff]
        %v558 = vld [vmem:[%s547 + $0x50] sm:$0xff]
        %v559 = vld [vmem:[%s547 + $0x58] sm:$0xff]
        %v560 = vld [vmem:[%s547 + $0x60] sm:$0xff]
        %v561 = vld [vmem:[%s547 + $0x68] sm:$0xff]
        %v562 = vld [vmem:[%s547 + $0x70] sm:$0xff]
        %v563 = vld [vmem:[%s547 + $0x78] sm:$0xff]
        %v564 = vpack.c.bf16 %v549, %v548
        %v565 = vpack.c.bf16 %v551, %v550
        %v566 = vpack.c.bf16 %v553, %v552
        %v567 = vpack.c.bf16 %v555, %v554
        %v568 = vpack.c.bf16 %v557, %v556
        %v569 = vpack.c.bf16 %v559, %v558
        %v570 = vpack.c.bf16 %v561, %v560
        %v571 = vpack.c.bf16 %v563, %v562
        %s572 = scalar_lea.vmem [#allocation4], 128
        %v573 = vld [vmem:[%s572] sm:$0xf]
        %v574 = vld [vmem:[%s572 + $0x4] sm:$0xf]
        %v575 = vld [vmem:[%s572 + $0x8] sm:$0xf]
        %v576 = vld [vmem:[%s572 + $0xc] sm:$0xf]
        %v577 = vld [vmem:[%s572 + $0x10] sm:$0xf]
        %v578 = vld [vmem:[%s572 + $0x14] sm:$0xf]
        %v579 = vld [vmem:[%s572 + $0x18] sm:$0xf]
        %v580 = vld [vmem:[%s572 + $0x1c] sm:$0xf]
        %v581 = vld [vmem:[%s572 + $0x20] sm:$0xf]
        %v582 = vld [vmem:[%s572 + $0x24] sm:$0xf]
        %v583 = vld [vmem:[%s572 + $0x28] sm:$0xf]
        %v584 = vld [vmem:[%s572 + $0x2c] sm:$0xf]
        %v585 = vld [vmem:[%s572 + $0x30] sm:$0xf]
        %v586 = vld [vmem:[%s572 + $0x34] sm:$0xf]
        %v587 = vld [vmem:[%s572 + $0x38] sm:$0xf]
        %v588 = vld [vmem:[%s572 + $0x3c] sm:$0xf]
        %v605 = vunpack.c.l.b16 %v573
        %v606 = vunpack.c.l.b16 %v574
        %v607 = vunpack.c.l.b16 %v575
        %v608 = vunpack.c.l.b16 %v576
        %v609 = vunpack.c.l.b16 %v577
        %v610 = vunpack.c.l.b16 %v578
        %v611 = vunpack.c.l.b16 %v579
        %v612 = vunpack.c.l.b16 %v580
        %v613 = vunpack.c.l.b16 %v581
        %v614 = vunpack.c.l.b16 %v582
        %v615 = vunpack.c.l.b16 %v583
        %v616 = vunpack.c.l.b16 %v584
        %v617 = vunpack.c.l.b16 %v585
        %v618 = vunpack.c.l.b16 %v586
        %v619 = vunpack.c.l.b16 %v587
        %v620 = vunpack.c.l.b16 %v588
        %v621 = vpack.c.b16 %v606, %v605
        %v622 = vpack.c.b16 %v608, %v607
        %v623 = vpack.c.b16 %v610, %v609
        %v624 = vpack.c.b16 %v612, %v611
        %v625 = vpack.c.b16 %v614, %v613
        %v626 = vpack.c.b16 %v616, %v615
        %v627 = vpack.c.b16 %v618, %v617
        %v628 = vpack.c.b16 %v620, %v619
        %637 = vmatpush.bf16.msra.mxu0 %v628
        %638 = vmatpush.bf16.msra.mxu0 %v627
        %639 = vmatpush.bf16.msra.mxu0 %v626
        %640 = vmatpush.bf16.msra.mxu0 %v625
        %641 = vmatpush.bf16.msra.mxu0 %v624
        %642 = vmatpush.bf16.msra.mxu0 %v623
        %643 = vmatpush.bf16.msra.mxu0 %v622
        %644 = vmatpush.bf16.msra.mxu0 %v621
        %645 = vmatmul.bf16.gmra.mxu0 %v564
        %v646 = vpop.f32.mrf.mxu0
        %v647 = vadd.f32 0.0, %v646
        %v648 = vpop.f32.mrf.mxu0
        %v649 = vadd.f32 0.0, %v648
        %650 = vmatmul.bf16.gmra.mxu0 %v565
        %v651 = vpop.f32.mrf.mxu0
        %v652 = vadd.f32 0.0, %v651
        %v653 = vpop.f32.mrf.mxu0
        %v654 = vadd.f32 0.0, %v653
        %655 = vmatmul.bf16.gmra.mxu0 %v566
        %v656 = vpop.f32.mrf.mxu0
        %v657 = vadd.f32 0.0, %v656
        %v658 = vpop.f32.mrf.mxu0
        %v659 = vadd.f32 0.0, %v658
        %660 = vmatmul.bf16.gmra.mxu0 %v567
        %v661 = vpop.f32.mrf.mxu0
        %v662 = vadd.f32 0.0, %v661
        %v663 = vpop.f32.mrf.mxu0
        %v664 = vadd.f32 0.0, %v663
        %665 = vmatmul.bf16.gmra.mxu0 %v568
        %v666 = vpop.f32.mrf.mxu0
        %v667 = vadd.f32 0.0, %v666
        %v668 = vpop.f32.mrf.mxu0
        %v669 = vadd.f32 0.0, %v668
        %670 = vmatmul.bf16.gmra.mxu0 %v569
        %v671 = vpop.f32.mrf.mxu0
        %v672 = vadd.f32 0.0, %v671
        %v673 = vpop.f32.mrf.mxu0
        %v674 = vadd.f32 0.0, %v673
        %675 = vmatmul.bf16.gmra.mxu0 %v570
        %v676 = vpop.f32.mrf.mxu0
        %v677 = vadd.f32 0.0, %v676
        %v678 = vpop.f32.mrf.mxu0
        %v679 = vadd.f32 0.0, %v678
        %680 = vmatmul.bf16.gmra.mxu0 %v571
        %v681 = vpop.f32.mrf.mxu0
        %v682 = vadd.f32 0.0, %v681
        %v683 = vpop.f32.mrf.mxu0
        %v684 = vadd.f32 0.0, %v683
        %685 = vdwg.mxu0
        %v686 = vadd.f32 %v507, %v647
        %v687 = vadd.f32 %v509, %v649
        %v688 = vadd.f32 %v512, %v652
        %v689 = vadd.f32 %v514, %v654
        %v690 = vadd.f32 %v517, %v657
        %v691 = vadd.f32 %v519, %v659
        %v692 = vadd.f32 %v522, %v662
        %v693 = vadd.f32 %v524, %v664
        %v694 = vadd.f32 %v527, %v667
        %v695 = vadd.f32 %v529, %v669
        %v696 = vadd.f32 %v532, %v672
        %v697 = vadd.f32 %v534, %v674
        %v698 = vadd.f32 %v537, %v677
        %v699 = vadd.f32 %v539, %v679
        %v700 = vadd.f32 %v542, %v682
        %v701 = vadd.f32 %v544, %v684
        %s702 = sadd.s32 %s267, 24
        %s703 = scalar_lea.vmem [#allocation2], %s702
        %v704 = vld [vmem:[%s703] sm:$0xff]
        %v705 = vld [vmem:[%s703 + $0x8] sm:$0xff]
        %v706 = vld [vmem:[%s703 + $0x10] sm:$0xff]
        %v707 = vld [vmem:[%s703 + $0x18] sm:$0xff]
        %v708 = vld [vmem:[%s703 + $0x20] sm:$0xff]
        %v709 = vld [vmem:[%s703 + $0x28] sm:$0xff]
        %v710 = vld [vmem:[%s703 + $0x30] sm:$0xff]
        %v711 = vld [vmem:[%s703 + $0x38] sm:$0xff]
        %v712 = vld [vmem:[%s703 + $0x40] sm:$0xff]
        %v713 = vld [vmem:[%s703 + $0x48] sm:$0xff]
        %v714 = vld [vmem:[%s703 + $0x50] sm:$0xff]
        %v715 = vld [vmem:[%s703 + $0x58] sm:$0xff]
        %v716 = vld [vmem:[%s703 + $0x60] sm:$0xff]
        %v717 = vld [vmem:[%s703 + $0x68] sm:$0xff]
        %v718 = vld [vmem:[%s703 + $0x70] sm:$0xff]
        %v719 = vld [vmem:[%s703 + $0x78] sm:$0xff]
        %v720 = vpack.c.bf16 %v705, %v704
        %v721 = vpack.c.bf16 %v707, %v706
        %v722 = vpack.c.bf16 %v709, %v708
        %v723 = vpack.c.bf16 %v711, %v710
        %v724 = vpack.c.bf16 %v713, %v712
        %v725 = vpack.c.bf16 %v715, %v714
        %v726 = vpack.c.bf16 %v717, %v716
        %v727 = vpack.c.bf16 %v719, %v718
        %s728 = scalar_lea.vmem [#allocation4], 192
        %v729 = vld [vmem:[%s728] sm:$0xf]
        %v730 = vld [vmem:[%s728 + $0x4] sm:$0xf]
        %v731 = vld [vmem:[%s728 + $0x8] sm:$0xf]
        %v732 = vld [vmem:[%s728 + $0xc] sm:$0xf]
        %v733 = vld [vmem:[%s728 + $0x10] sm:$0xf]
        %v734 = vld [vmem:[%s728 + $0x14] sm:$0xf]
        %v735 = vld [vmem:[%s728 + $0x18] sm:$0xf]
        %v736 = vld [vmem:[%s728 + $0x1c] sm:$0xf]
        %v737 = vld [vmem:[%s728 + $0x20] sm:$0xf]
        %v738 = vld [vmem:[%s728 + $0x24] sm:$0xf]
        %v739 = vld [vmem:[%s728 + $0x28] sm:$0xf]
        %v740 = vld [vmem:[%s728 + $0x2c] sm:$0xf]
        %v741 = vld [vmem:[%s728 + $0x30] sm:$0xf]
        %v742 = vld [vmem:[%s728 + $0x34] sm:$0xf]
        %v743 = vld [vmem:[%s728 + $0x38] sm:$0xf]
        %v744 = vld [vmem:[%s728 + $0x3c] sm:$0xf]
        %v761 = vunpack.c.l.b16 %v729
        %v762 = vunpack.c.l.b16 %v730
        %v763 = vunpack.c.l.b16 %v731
        %v764 = vunpack.c.l.b16 %v732
        %v765 = vunpack.c.l.b16 %v733
        %v766 = vunpack.c.l.b16 %v734
        %v767 = vunpack.c.l.b16 %v735
        %v768 = vunpack.c.l.b16 %v736
        %v769 = vunpack.c.l.b16 %v737
        %v770 = vunpack.c.l.b16 %v738
        %v771 = vunpack.c.l.b16 %v739
        %v772 = vunpack.c.l.b16 %v740
        %v773 = vunpack.c.l.b16 %v741
        %v774 = vunpack.c.l.b16 %v742
        %v775 = vunpack.c.l.b16 %v743
        %v776 = vunpack.c.l.b16 %v744
        %v777 = vpack.c.b16 %v762, %v761
        %v778 = vpack.c.b16 %v764, %v763
        %v779 = vpack.c.b16 %v766, %v765
        %v780 = vpack.c.b16 %v768, %v767
        %v781 = vpack.c.b16 %v770, %v769
        %v782 = vpack.c.b16 %v772, %v771
        %v783 = vpack.c.b16 %v774, %v773
        %v784 = vpack.c.b16 %v776, %v775
        %793 = vmatpush.bf16.msra.mxu0 %v784
        %794 = vmatpush.bf16.msra.mxu0 %v783
        %795 = vmatpush.bf16.msra.mxu0 %v782
        %796 = vmatpush.bf16.msra.mxu0 %v781
        %797 = vmatpush.bf16.msra.mxu0 %v780
        %798 = vmatpush.bf16.msra.mxu0 %v779
        %799 = vmatpush.bf16.msra.mxu0 %v778
        %800 = vmatpush.bf16.msra.mxu0 %v777
        %801 = vmatmul.bf16.gmra.mxu0 %v720
        %v802 = vpop.f32.mrf.mxu0
        %v803 = vadd.f32 0.0, %v802
        %v804 = vpop.f32.mrf.mxu0
        %v805 = vadd.f32 0.0, %v804
        %806 = vmatmul.bf16.gmra.mxu0 %v721
        %v807 = vpop.f32.mrf.mxu0
        %v808 = vadd.f32 0.0, %v807
        %v809 = vpop.f32.mrf.mxu0
        %v810 = vadd.f32 0.0, %v809
        %811 = vmatmul.bf16.gmra.mxu0 %v722
        %v812 = vpop.f32.mrf.mxu0
        %v813 = vadd.f32 0.0, %v812
        %v814 = vpop.f32.mrf.mxu0
        %v815 = vadd.f32 0.0, %v814
        %816 = vmatmul.bf16.gmra.mxu0 %v723
        %v817 = vpop.f32.mrf.mxu0
        %v818 = vadd.f32 0.0, %v817
        %v819 = vpop.f32.mrf.mxu0
        %v820 = vadd.f32 0.0, %v819
        %821 = vmatmul.bf16.gmra.mxu0 %v724
        %v822 = vpop.f32.mrf.mxu0
        %v823 = vadd.f32 0.0, %v822
        %v824 = vpop.f32.mrf.mxu0
        %v825 = vadd.f32 0.0, %v824
        %826 = vmatmul.bf16.gmra.mxu0 %v725
        %v827 = vpop.f32.mrf.mxu0
        %v828 = vadd.f32 0.0, %v827
        %v829 = vpop.f32.mrf.mxu0
        %v830 = vadd.f32 0.0, %v829
        %831 = vmatmul.bf16.gmra.mxu0 %v726
        %v832 = vpop.f32.mrf.mxu0
        %v833 = vadd.f32 0.0, %v832
        %v834 = vpop.f32.mrf.mxu0
        %v835 = vadd.f32 0.0, %v834
        %836 = vmatmul.bf16.gmra.mxu0 %v727
        %v837 = vpop.f32.mrf.mxu0
        %v838 = vadd.f32 0.0, %v837
        %v839 = vpop.f32.mrf.mxu0
        %v840 = vadd.f32 0.0, %v839
        %841 = vdwg.mxu0
        %v842 = vadd.f32 %v686, %v803
        %v843 = vadd.f32 %v687, %v805
        %v844 = vadd.f32 %v688, %v808
        %v845 = vadd.f32 %v689, %v810
        %v846 = vadd.f32 %v690, %v813
        %v847 = vadd.f32 %v691, %v815
        %v848 = vadd.f32 %v692, %v818
        %v849 = vadd.f32 %v693, %v820
        %v850 = vadd.f32 %v694, %v823
        %v851 = vadd.f32 %v695, %v825
        %v852 = vadd.f32 %v696, %v828
        %v853 = vadd.f32 %v697, %v830
        %v854 = vadd.f32 %v698, %v833
        %v855 = vadd.f32 %v699, %v835
        %v856 = vadd.f32 %v700, %v838
        %v857 = vadd.f32 %v701, %v840
        %v858 = vld [vmem:[%s2] sm:$0x1]
        %v860 = vperm.slane %v858, 0
        %v862 = vadd.f32 %v842, %v860
        %v863 = vadd.f32 %v843, %v860
        %v864 = vadd.f32 %v844, %v860
        %v865 = vadd.f32 %v845, %v860
        %v866 = vadd.f32 %v846, %v860
        %v867 = vadd.f32 %v847, %v860
        %v868 = vadd.f32 %v848, %v860
        %v869 = vadd.f32 %v849, %v860
        %v870 = vadd.f32 %v850, %v860
        %v871 = vadd.f32 %v851, %v860
        %v872 = vadd.f32 %v852, %v860
        %v873 = vadd.f32 %v853, %v860
        %v874 = vadd.f32 %v854, %v860
        %v875 = vadd.f32 %v855, %v860
        %v876 = vadd.f32 %v856, %v860
        %v877 = vadd.f32 %v857, %v860
        %v878 = vmax.f32 %v862, 0.0
        %v879 = vmax.f32 %v863, 0.0
        %v880 = vmax.f32 %v864, 0.0
        %v881 = vmax.f32 %v865, 0.0
        %v882 = vmax.f32 %v866, 0.0
        %v883 = vmax.f32 %v867, 0.0
        %v884 = vmax.f32 %v868, 0.0
        %v885 = vmax.f32 %v869, 0.0
        %v886 = vmax.f32 %v870, 0.0
        %v887 = vmax.f32 %v871, 0.0
        %v888 = vmax.f32 %v872, 0.0
        %v889 = vmax.f32 %v873, 0.0
        %v890 = vmax.f32 %v874, 0.0
        %v891 = vmax.f32 %v875, 0.0
        %v892 = vmax.f32 %v876, 0.0
        %v893 = vmax.f32 %v877, 0.0
        %v894 = vadd.f32 %v878, %v704
        %v895 = vadd.f32 %v879, %v705
        %v896 = vadd.f32 %v880, %v706
        %v897 = vadd.f32 %v881, %v707
        %v898 = vadd.f32 %v882, %v708
        %v899 = vadd.f32 %v883, %v709
        %v900 = vadd.f32 %v884, %v710
        %v901 = vadd.f32 %v885, %v711
        %v902 = vadd.f32 %v886, %v712
        %v903 = vadd.f32 %v887, %v713
        %v904 = vadd.f32 %v888, %v714
        %v905 = vadd.f32 %v889, %v715
        %v906 = vadd.f32 %v890, %v716
        %v907 = vadd.f32 %v891, %v717
        %v908 = vadd.f32 %v892, %v718
        %v909 = vadd.f32 %v893, %v719
        %910 = vadd.xlane.f32.xlu0 %v894
        %v911 = vpop.xlane.xlu0 %910
        %912 = vadd.xlane.f32.xlu0 %v895
        %v913 = vpop.xlane.xlu0 %912
        %914 = vadd.xlane.f32.xlu0 %v896
        %v915 = vpop.xlane.xlu0 %914
        %916 = vadd.xlane.f32.xlu0 %v897
        %v917 = vpop.xlane.xlu0 %916
        %918 = vadd.xlane.f32.xlu0 %v898
        %v919 = vpop.xlane.xlu0 %918
        %920 = vadd.xlane.f32.xlu0 %v899
        %v921 = vpop.xlane.xlu0 %920
        %922 = vadd.xlane.f32.xlu0 %v900
        %v923 = vpop.xlane.xlu0 %922
        %924 = vadd.xlane.f32.xlu0 %v901
        %v925 = vpop.xlane.xlu0 %924
        %926 = vadd.xlane.f32.xlu0 %v902
        %v927 = vpop.xlane.xlu0 %926
        %928 = vadd.xlane.f32.xlu0 %v903
        %v929 = vpop.xlane.xlu0 %928
        %930 = vadd.xlane.f32.xlu0 %v904
        %v931 = vpop.xlane.xlu0 %930
        %932 = vadd.xlane.f32.xlu0 %v905
        %v933 = vpop.xlane.xlu0 %932
        %934 = vadd.xlane.f32.xlu0 %v906
        %v935 = vpop.xlane.xlu0 %934
        %936 = vadd.xlane.f32.xlu0 %v907
        %v937 = vpop.xlane.xlu0 %936
        %938 = vadd.xlane.f32.xlu0 %v908
        %v939 = vpop.xlane.xlu0 %938
        %940 = vadd.xlane.f32.xlu0 %v909
        %v941 = vpop.xlane.xlu0 %940
        %v942 = vmul.f32 %v911, 0.0078125
        %v943 = vmul.f32 %v913, 0.0078125
        %v944 = vmul.f32 %v915, 0.0078125
        %v945 = vmul.f32 %v917, 0.0078125
        %v946 = vmul.f32 %v919, 0.0078125
        %v947 = vmul.f32 %v921, 0.0078125
        %v948 = vmul.f32 %v923, 0.0078125
        %v949 = vmul.f32 %v925, 0.0078125
        %v950 = vmul.f32 %v927, 0.0078125
        %v951 = vmul.f32 %v929, 0.0078125
        %v952 = vmul.f32 %v931, 0.0078125
        %v953 = vmul.f32 %v933, 0.0078125
        %v954 = vmul.f32 %v935, 0.0078125
        %v955 = vmul.f32 %v937, 0.0078125
        %v956 = vmul.f32 %v939, 0.0078125
        %v957 = vmul.f32 %v941, 0.0078125
        %v958 = vsub.f32 %v894, %v942
        %v959 = vsub.f32 %v895, %v943
        %v960 = vsub.f32 %v896, %v944
        %v961 = vsub.f32 %v897, %v945
        %v962 = vsub.f32 %v898, %v946
        %v963 = vsub.f32 %v899, %v947
        %v964 = vsub.f32 %v900, %v948
        %v965 = vsub.f32 %v901, %v949
        %v966 = vsub.f32 %v902, %v950
        %v967 = vsub.f32 %v903, %v951
        %v968 = vsub.f32 %v904, %v952
        %v969 = vsub.f32 %v905, %v953
        %v970 = vsub.f32 %v906, %v954
        %v971 = vsub.f32 %v907, %v955
        %v972 = vsub.f32 %v908, %v956
        %v973 = vsub.f32 %v909, %v957
        %v974 = vmul.f32 %v958, %v958
        %v975 = vmul.f32 %v959, %v959
        %v976 = vmul.f32 %v960, %v960
        %v977 = vmul.f32 %v961, %v961
        %v978 = vmul.f32 %v962, %v962
        %v979 = vmul.f32 %v963, %v963
        %v980 = vmul.f32 %v964, %v964
        %v981 = vmul.f32 %v965, %v965
        %v982 = vmul.f32 %v966, %v966
        %v983 = vmul.f32 %v967, %v967
        %v984 = vmul.f32 %v968, %v968
        %v985 = vmul.f32 %v969, %v969
        %v986 = vmul.f32 %v970, %v970
        %v987 = vmul.f32 %v971, %v971
        %v988 = vmul.f32 %v972, %v972
        %v989 = vmul.f32 %v973, %v973
        %990 = vadd.xlane.f32.xlu0 %v974
        %v991 = vpop.xlane.xlu0 %990
        %992 = vadd.xlane.f32.xlu0 %v975
        %v993 = vpop.xlane.xlu0 %992
        %994 = vadd.xlane.f32.xlu0 %v976
        %v995 = vpop.xlane.xlu0 %994
        %996 = vadd.xlane.f32.xlu0 %v977
        %v997 = vpop.xlane.xlu0 %996
        %998 = vadd.xlane.f32.xlu0 %v978
        %v999 = vpop.xlane.xlu0 %998
        %1000 = vadd.xlane.f32.xlu0 %v979
        %v1001 = vpop.xlane.xlu0 %1000
        %1002 = vadd.xlane.f32.xlu0 %v980
        %v1003 = vpop.xlane.xlu0 %1002
        %1004 = vadd.xlane.f32.xlu0 %v981
        %v1005 = vpop.xlane.xlu0 %1004
        %1006 = vadd.xlane.f32.xlu0 %v982
        %v1007 = vpop.xlane.xlu0 %1006
        %1008 = vadd.xlane.f32.xlu0 %v983
        %v1009 = vpop.xlane.xlu0 %1008
        %1010 = vadd.xlane.f32.xlu0 %v984
        %v1011 = vpop.xlane.xlu0 %1010
        %1012 = vadd.xlane.f32.xlu0 %v985
        %v1013 = vpop.xlane.xlu0 %1012
        %1014 = vadd.xlane.f32.xlu0 %v986
        %v1015 = vpop.xlane.xlu0 %1014
        %1016 = vadd.xlane.f32.xlu0 %v987
        %v1017 = vpop.xlane.xlu0 %1016
        %1018 = vadd.xlane.f32.xlu0 %v988
        %v1019 = vpop.xlane.xlu0 %1018
        %1020 = vadd.xlane.f32.xlu0 %v989
        %v1021 = vpop.xlane.xlu0 %1020
        %v1022 = vmul.f32 %v991, 0.0078125
        %v1023 = vmul.f32 %v993, 0.0078125
        %v1024 = vmul.f32 %v995, 0.0078125
        %v1025 = vmul.f32 %v997, 0.0078125
        %v1026 = vmul.f32 %v999, 0.0078125
        %v1027 = vmul.f32 %v1001, 0.0078125
        %v1028 = vmul.f32 %v1003, 0.0078125
        %v1029 = vmul.f32 %v1005, 0.0078125
        %v1030 = vmul.f32 %v1007, 0.0078125
        %v1031 = vmul.f32 %v1009, 0.0078125
        %v1032 = vmul.f32 %v1011, 0.0078125
        %v1033 = vmul.f32 %v1013, 0.0078125
        %v1034 = vmul.f32 %v1015, 0.0078125
        %v1035 = vmul.f32 %v1017, 0.0078125
        %v1036 = vmul.f32 %v1019, 0.0078125
        %v1037 = vmul.f32 %v1021, 0.0078125
        %v1038 = vadd.f32 %v1022, 1e-05
        %v1039 = vadd.f32 %v1023, 1e-05
        %v1040 = vadd.f32 %v1024, 1e-05
        %v1041 = vadd.f32 %v1025, 1e-05
        %v1042 = vadd.f32 %v1026, 1e-05
        %v1043 = vadd.f32 %v1027, 1e-05
        %v1044 = vadd.f32 %v1028, 1e-05
        %v1045 = vadd.f32 %v1029, 1e-05
        %v1046 = vadd.f32 %v1030, 1e-05
        %v1047 = vadd.f32 %v1031, 1e-05
        %v1048 = vadd.f32 %v1032, 1e-05
        %v1049 = vadd.f32 %v1033, 1e-05
        %v1050 = vadd.f32 %v1034, 1e-05
        %v1051 = vadd.f32 %v1035, 1e-05
        %v1052 = vadd.f32 %v1036, 1e-05
        %v1053 = vadd.f32 %v1037, 1e-05
        %v1054 = vrsqrt.pop %v1038
        %v1055 = vmul.f32 %v1054, %v1038
        %v1056 = vmul.f32 %v1055, %v1054
        %v1057 = vmul.f32 0.5, %v1056
        %v1058 = vsub.f32 1.5, %v1057
        %v1059 = vmul.f32 %v1054, %v1058
        %vm1060 = vweird.f32 %v1038
        %vm1061 = vweird.f32 %v1054
        %vm1062 = vmor %vm1060, %vm1061
        %v1063 = vsel %vm1062, %v1054, %v1059
        %v1064 = vrsqrt.pop %v1039
        %v1065 = vmul.f32 %v1064, %v1039
        %v1066 = vmul.f32 %v1065, %v1064
        %v1067 = vmul.f32 0.5, %v1066
        %v1068 = vsub.f32 1.5, %v1067
        %v1069 = vmul.f32 %v1064, %v1068
        %vm1070 = vweird.f32 %v1039
        %vm1071 = vweird.f32 %v1064
        %vm1072 = vmor %vm1070, %vm1071
        %v1073 = vsel %vm1072, %v1064, %v1069
        %v1074 = vrsqrt.pop %v1040
        %v1075 = vmul.f32 %v1074, %v1040
        %v1076 = vmul.f32 %v1075, %v1074
        %v1077 = vmul.f32 0.5, %v1076
        %v1078 = vsub.f32 1.5, %v1077
        %v1079 = vmul.f32 %v1074, %v1078
        %vm1080 = vweird.f32 %v1040
        %vm1081 = vweird.f32 %v1074
        %vm1082 = vmor %vm1080, %vm1081
        %v1083 = vsel %vm1082, %v1074, %v1079
        %v1084 = vrsqrt.pop %v1041
        %v1085 = vmul.f32 %v1084, %v1041
        %v1086 = vmul.f32 %v1085, %v1084
        %v1087 = vmul.f32 0.5, %v1086
        %v1088 = vsub.f32 1.5, %v1087
        %v1089 = vmul.f32 %v1084, %v1088
        %vm1090 = vweird.f32 %v1041
        %vm1091 = vweird.f32 %v1084
        %vm1092 = vmor %vm1090, %vm1091
        %v1093 = vsel %vm1092, %v1084, %v1089
        %v1094 = vrsqrt.pop %v1042
        %v1095 = vmul.f32 %v1094, %v1042
        %v1096 = vmul.f32 %v1095, %v1094
        %v1097 = vmul.f32 0.5, %v1096
        %v1098 = vsub.f32 1.5, %v1097
        %v1099 = vmul.f32 %v1094, %v1098
        %vm1100 = vweird.f32 %v1042
        %vm1101 = vweird.f32 %v1094
        %vm1102 = vmor %vm1100, %vm1101
        %v1103 = vsel %vm1102, %v1094, %v1099
        %v1104 = vrsqrt.pop %v1043
        %v1105 = vmul.f32 %v1104, %v1043
        %v1106 = vmul.f32 %v1105, %v1104
        %v1107 = vmul.f32 0.5, %v1106
        %v1108 = vsub.f32 1.5, %v1107
        %v1109 = vmul.f32 %v1104, %v1108
        %vm1110 = vweird.f32 %v1043
        %vm1111 = vweird.f32 %v1104
        %vm1112 = vmor %vm1110, %vm1111
        %v1113 = vsel %vm1112, %v1104, %v1109
        %v1114 = vrsqrt.pop %v1044
        %v1115 = vmul.f32 %v1114, %v1044
        %v1116 = vmul.f32 %v1115, %v1114
        %v1117 = vmul.f32 0.5, %v1116
        %v1118 = vsub.f32 1.5, %v1117
        %v1119 = vmul.f32 %v1114, %v1118
        %vm1120 = vweird.f32 %v1044
        %vm1121 = vweird.f32 %v1114
        %vm1122 = vmor %vm1120, %vm1121
        %v1123 = vsel %vm1122, %v1114, %v1119
        %v1124 = vrsqrt.pop %v1045
        %v1125 = vmul.f32 %v1124, %v1045
        %v1126 = vmul.f32 %v1125, %v1124
        %v1127 = vmul.f32 0.5, %v1126
        %v1128 = vsub.f32 1.5, %v1127
        %v1129 = vmul.f32 %v1124, %v1128
        %vm1130 = vweird.f32 %v1045
        %vm1131 = vweird.f32 %v1124
        %vm1132 = vmor %vm1130, %vm1131
        %v1133 = vsel %vm1132, %v1124, %v1129
        %v1134 = vrsqrt.pop %v1046
        %v1135 = vmul.f32 %v1134, %v1046
        %v1136 = vmul.f32 %v1135, %v1134
        %v1137 = vmul.f32 0.5, %v1136
        %v1138 = vsub.f32 1.5, %v1137
        %v1139 = vmul.f32 %v1134, %v1138
        %vm1140 = vweird.f32 %v1046
        %vm1141 = vweird.f32 %v1134
        %vm1142 = vmor %vm1140, %vm1141
        %v1143 = vsel %vm1142, %v1134, %v1139
        %v1144 = vrsqrt.pop %v1047
        %v1145 = vmul.f32 %v1144, %v1047
        %v1146 = vmul.f32 %v1145, %v1144
        %v1147 = vmul.f32 0.5, %v1146
        %v1148 = vsub.f32 1.5, %v1147
        %v1149 = vmul.f32 %v1144, %v1148
        %vm1150 = vweird.f32 %v1047
        %vm1151 = vweird.f32 %v1144
        %vm1152 = vmor %vm1150, %vm1151
        %v1153 = vsel %vm1152, %v1144, %v1149
        %v1154 = vrsqrt.pop %v1048
        %v1155 = vmul.f32 %v1154, %v1048
        %v1156 = vmul.f32 %v1155, %v1154
        %v1157 = vmul.f32 0.5, %v1156
        %v1158 = vsub.f32 1.5, %v1157
        %v1159 = vmul.f32 %v1154, %v1158
        %vm1160 = vweird.f32 %v1048
        %vm1161 = vweird.f32 %v1154
        %vm1162 = vmor %vm1160, %vm1161
        %v1163 = vsel %vm1162, %v1154, %v1159
        %v1164 = vrsqrt.pop %v1049
        %v1165 = vmul.f32 %v1164, %v1049
        %v1166 = vmul.f32 %v1165, %v1164
        %v1167 = vmul.f32 0.5, %v1166
        %v1168 = vsub.f32 1.5, %v1167
        %v1169 = vmul.f32 %v1164, %v1168
        %vm1170 = vweird.f32 %v1049
        %vm1171 = vweird.f32 %v1164
        %vm1172 = vmor %vm1170, %vm1171
        %v1173 = vsel %vm1172, %v1164, %v1169
        %v1174 = vrsqrt.pop %v1050
        %v1175 = vmul.f32 %v1174, %v1050
        %v1176 = vmul.f32 %v1175, %v1174
        %v1177 = vmul.f32 0.5, %v1176
        %v1178 = vsub.f32 1.5, %v1177
        %v1179 = vmul.f32 %v1174, %v1178
        %vm1180 = vweird.f32 %v1050
        %vm1181 = vweird.f32 %v1174
        %vm1182 = vmor %vm1180, %vm1181
        %v1183 = vsel %vm1182, %v1174, %v1179
        %v1184 = vrsqrt.pop %v1051
        %v1185 = vmul.f32 %v1184, %v1051
        %v1186 = vmul.f32 %v1185, %v1184
        %v1187 = vmul.f32 0.5, %v1186
        %v1188 = vsub.f32 1.5, %v1187
        %v1189 = vmul.f32 %v1184, %v1188
        %vm1190 = vweird.f32 %v1051
        %vm1191 = vweird.f32 %v1184
        %vm1192 = vmor %vm1190, %vm1191
        %v1193 = vsel %vm1192, %v1184, %v1189
        %v1194 = vrsqrt.pop %v1052
        %v1195 = vmul.f32 %v1194, %v1052
        %v1196 = vmul.f32 %v1195, %v1194
        %v1197 = vmul.f32 0.5, %v1196
        %v1198 = vsub.f32 1.5, %v1197
        %v1199 = vmul.f32 %v1194, %v1198
        %vm1200 = vweird.f32 %v1052
        %vm1201 = vweird.f32 %v1194
        %vm1202 = vmor %vm1200, %vm1201
        %v1203 = vsel %vm1202, %v1194, %v1199
        %v1204 = vrsqrt.pop %v1053
        %v1205 = vmul.f32 %v1204, %v1053
        %v1206 = vmul.f32 %v1205, %v1204
        %v1207 = vmul.f32 0.5, %v1206
        %v1208 = vsub.f32 1.5, %v1207
        %v1209 = vmul.f32 %v1204, %v1208
        %vm1210 = vweird.f32 %v1053
        %vm1211 = vweird.f32 %v1204
        %vm1212 = vmor %vm1210, %vm1211
        %v1213 = vsel %vm1212, %v1204, %v1209
        %v1214 = vmul.f32 %v958, %v1063
        %v1215 = vmul.f32 %v959, %v1073
        %v1216 = vmul.f32 %v960, %v1083
        %v1217 = vmul.f32 %v961, %v1093
        %v1218 = vmul.f32 %v962, %v1103
        %v1219 = vmul.f32 %v963, %v1113
        %v1220 = vmul.f32 %v964, %v1123
        %v1221 = vmul.f32 %v965, %v1133
        %v1222 = vmul.f32 %v966, %v1143
        %v1223 = vmul.f32 %v967, %v1153
        %v1224 = vmul.f32 %v968, %v1163
        %v1225 = vmul.f32 %v969, %v1173
        %v1226 = vmul.f32 %v970, %v1183
        %v1227 = vmul.f32 %v971, %v1193
        %v1228 = vmul.f32 %v972, %v1203
        %v1229 = vmul.f32 %v973, %v1213
        %v1230 = vld [vmem:[%s3] sm:$0x1]
        %v1232 = vperm.slane %v1230, 0
        %v1234 = vmul.f32 %v1214, %v1232
        %v1235 = vmul.f32 %v1215, %v1232
        %v1236 = vmul.f32 %v1216, %v1232
        %v1237 = vmul.f32 %v1217, %v1232
        %v1238 = vmul.f32 %v1218, %v1232
        %v1239 = vmul.f32 %v1219, %v1232
        %v1240 = vmul.f32 %v1220, %v1232
        %v1241 = vmul.f32 %v1221, %v1232
        %v1242 = vmul.f32 %v1222, %v1232
        %v1243 = vmul.f32 %v1223, %v1232
        %v1244 = vmul.f32 %v1224, %v1232
        %v1245 = vmul.f32 %v1225, %v1232
        %v1246 = vmul.f32 %v1226, %v1232
        %v1247 = vmul.f32 %v1227, %v1232
        %v1248 = vmul.f32 %v1228, %v1232
        %v1249 = vmul.f32 %v1229, %v1232
        %v1250 = vld [vmem:[#allocation7] sm:$0x1]
        %v1252 = vperm.slane %v1250, 0
        %v1254 = vadd.f32 %v1234, %v1252
        %v1255 = vadd.f32 %v1235, %v1252
        %v1256 = vadd.f32 %v1236, %v1252
        %v1257 = vadd.f32 %v1237, %v1252
        %v1258 = vadd.f32 %v1238, %v1252
        %v1259 = vadd.f32 %v1239, %v1252
        %v1260 = vadd.f32 %v1240, %v1252
        %v1261 = vadd.f32 %v1241, %v1252
        %v1262 = vadd.f32 %v1242, %v1252
        %v1263 = vadd.f32 %v1243, %v1252
        %v1264 = vadd.f32 %v1244, %v1252
        %v1265 = vadd.f32 %v1245, %v1252
        %v1266 = vadd.f32 %v1246, %v1252
        %v1267 = vadd.f32 %v1247, %v1252
        %v1268 = vadd.f32 %v1248, %v1252
        %v1269 = vadd.f32 %v1249, %v1252
        %1270 = vst [vmem:[%s208] sm:$0xff] %v1254
        %1271 = vst [vmem:[%s208 + $0x8] sm:$0xff] %v1255
        %1272 = vst [vmem:[%s208 + $0x10] sm:$0xff] %v1256
        %1273 = vst [vmem:[%s208 + $0x18] sm:$0xff] %v1257
        %1274 = vst [vmem:[%s208 + $0x20] sm:$0xff] %v1258
        %1275 = vst [vmem:[%s208 + $0x28] sm:$0xff] %v1259
        %1276 = vst [vmem:[%s208 + $0x30] sm:$0xff] %v1260
        %1277 = vst [vmem:[%s208 + $0x38] sm:$0xff] %v1261
        %1278 = vst [vmem:[%s208 + $0x40] sm:$0xff] %v1262
        %1279 = vst [vmem:[%s208 + $0x48] sm:$0xff] %v1263
        %1280 = vst [vmem:[%s208 + $0x50] sm:$0xff] %v1264
        %1281 = vst [vmem:[%s208 + $0x58] sm:$0xff] %v1265
        %1282 = vst [vmem:[%s208 + $0x60] sm:$0xff] %v1266
        %1283 = vst [vmem:[%s208 + $0x68] sm:$0xff] %v1267
        %1284 = vst [vmem:[%s208 + $0x70] sm:$0xff] %v1268
        %1285 = vst [vmem:[%s208 + $0x78] sm:$0xff] %v1269
        %s1286 = sand.u32 %s113, 1
        %s1287 = scalar_lea.sflag [#allocation6], %s1286
        %s1288 = sand.u32 %s113, 1
        %s1289 = smul.addr %s1288, 128
        %s1290 = scalar_lea.vmem [#allocation9], %s1289
        // Predicated region
        $region61: #{tds_conv2d_block_apply.1} parent=35 // pred_check
          %p1291 = pneg %p123
        $region62: #{tds_conv2d_block_apply.1} parent=35 // pred_check_branch
          %1293 = sbr.rel (%p1291) target = $region64
        $region63: #{tds_conv2d_block_apply.1} parent=35 // pred_region
          %s1294 = smul.u32 16, %s21
          %s1295 = ssub.s32 45, %s1294
          %p1296 = scmp.lt.s32.totalorder %s1295, 16
          %s1297 = scalar_select %p1296, %s1295, 16
          %s1298 = smul.u32 8, %s1297
          %s1299 = ssub.s32 128, %s1298
          %s1300 = sshll.u32 %s1299, 4
          %1301 = vsyncadd %s1287, %s1300
          %p1302 = scmp.ne.s32.totalorder 0, %s1298
          %s1303 = smul.addr %s1294, 8
          %s1304 = scalar_lea.hbm %s5, %s1303
          %s1305 = smul.u32 8, %s1297
          %s1306 = sshll.u32 %s1290, 4
          %s1307 = int_to_ptr.vmem [resolvable:$true] %s1306
          %s1308 = sshll.u32 %s1304, 4
          %s1309 = int_to_ptr.hbm [resolvable:$true] %s1308
          %s1310 = sshll.u32 %s1305, 4
          %1314 = dma.vmem_to_hbm [thread:$0]  (%p1302), %s1307, %s1310, %s1309, %s1287, 128, 128, 8
        $region64: #{tds_conv2d_block_apply.1} parent=35 // pred_fallthru
          _
      $region36: #{tds_conv2d_block_apply.1} parent=5 // pred_fallthru
        _
      %p1315 = scmp.le.s32.totalorder 2, %s16
      // Predicated region
      $region65: #{tds_conv2d_block_apply.1} parent=5 // pred_check
        %p1316 = pneg %p1315
      $region66: #{tds_conv2d_block_apply.1} parent=5 // pred_check_branch
        %1318 = sbr.rel (%p1316) target = $region68
      $region67: #{tds_conv2d_block_apply.1} parent=5 // pred_region
        %s1319 = ssub.s32 %s16, 2
        // Predicated region
        $region69: #{tds_conv2d_block_apply.1} parent=67 // pred_check
          %p1320 = pneg %p129
        $region70: #{tds_conv2d_block_apply.1} parent=67 // pred_check_branch
          %1322 = sbr.rel (%p1320) target = $region72
        $region71: #{tds_conv2d_block_apply.1} parent=67 // pred_region
          %s1323 = sand.u32 %s114, 1
          %s1324 = scalar_lea.sflag [#allocation6], %s1323
          %s1325 = sand.u32 %s114, 1
          %s1326 = smul.addr %s1325, 128
          %s1327 = scalar_lea.vmem [#allocation9], %s1326
          %1329 = dma.done %s1324, 2048
        $region72: #{tds_conv2d_block_apply.1} parent=67 // pred_fallthru
          _
      $region68: #{tds_conv2d_block_apply.1} parent=5 // pred_fallthru
        _
    $region6: #{tds_conv2d_block_apply.1} parent=1 // loop_footer
      %s20 = sadd.s32 1, %s16
    $region7: #{tds_conv2d_block_apply.1} parent=1 // loop_footer_branch
      %15 = sbr.rel target = $region3
    $region8: #{tds_conv2d_block_apply.1} parent=1 // loop_exit
      _
    %1330 = vsyncpa [#allocation5], 1
    %s1331 = scalar_lea.sflag [#allocation5], 1
    %1332 = vsyncpa %s1331, 1
    %1333 = vsyncpa [#allocation8], 1
    %1334 = vsyncpa [#allocation6], 1
    %s1335 = scalar_lea.sflag [#allocation6], 1
    %1336 = vsyncpa %s1335, 1
  %1337 = vsyncmov [#allocation3]
  %s1338 = vpop.sfrf %1337
  %p1339 = scmp.eq.s32.totalorder %s1338, 0
  %p1340 = pneg %p1339
  %1342 = shalt.err (%p1340)
  %s1343 = scalar_lea.sflag [#allocation3], 1
  %1344 = vsyncmov %s1343
  %s1345 = vpop.sfrf %1344
  %p1346 = scmp.eq.s32.totalorder %s1345, 0
  %p1347 = pneg %p1346
  %1349 = shalt.err (%p1347)

</llo_original>
